<compile_context>
chip_gen: v7x
topology: tpu7x:2x2x1
jax: 0.10.0
libtpu: 0.0.40
codegen_flags: <defaults>
</compile_context>

<pallas_src>
import functools

import jax
import jax.numpy as jnp
from jax import lax
from jax.experimental import pallas as pl
from jax.experimental.pallas import tpu as pltpu

NEG_INF = -1.0e30  # finite "minus infinity" (avoids inf-inf NaNs in the online softmax)


# ------------------------------- fused kernel ------------------------------
def _conv_flash_kernel(
    zq_ref, zkv_ref,                                   # node features (q view / kv view)
    wq_ref, bq_ref, wk_ref, bk_ref, wv_ref, bv_ref,    # per-head projection weights
    wo_ref, bo_ref,                                    # per-head output projection
    o_ref,                                             # output (1, TQ, C_out)
    q_scr, m_scr, l_scr, acc_scr, out_scr,             # VMEM scratch
    *, scale, n_real, tkv, mask_kv,
):
    """Grid = (batch, q_tile, head, kv_tile).

    batch/q_tile are 'parallel'; head and kv_tile are 'arbitrary' reduction axes
    (online softmax over kv tiles, Wo-folded accumulation over heads).
    """
    h = pl.program_id(2)
    kv = pl.program_id(3)
    n_heads = pl.num_programs(2)
    n_kv = pl.num_programs(3)

    # ---- fresh (batch, q-tile) block: zero the Wo accumulator ----
    @pl.when((h == 0) & (kv == 0))
    def _():
        out_scr[...] = jnp.zeros_like(out_scr)

    # ---- fresh head: project Q for this head, reset online-softmax state ----
    @pl.when(kv == 0)
    def _():
        zq = zq_ref[0].astype(jnp.bfloat16)
        q = jnp.dot(zq, wq_ref[0], preferred_element_type=jnp.float32) + bq_ref[0]
        q_scr[...] = q.astype(jnp.bfloat16)
        m_scr[...] = jnp.full_like(m_scr, NEG_INF)
        l_scr[...] = jnp.zeros_like(l_scr)
        acc_scr[...] = jnp.zeros_like(acc_scr)

    # ---- K/V projections for this kv tile (bf16 MXU operands, f32 accumulate) ----
    zkv = zkv_ref[0].astype(jnp.bfloat16)
    k = (jnp.dot(zkv, wk_ref[0], preferred_element_type=jnp.float32)
         + bk_ref[0]).astype(jnp.bfloat16)
    v = (jnp.dot(zkv, wv_ref[0], preferred_element_type=jnp.float32)
         + bv_ref[0]).astype(jnp.bfloat16)

    # ---- scores: q @ k^T (contract last dims; no materialized transpose) ----
    s = lax.dot_general(q_scr[...], k, (((1,), (1,)), ((), ())),
                        preferred_element_type=jnp.float32) * scale
    if mask_kv:  # static: only emitted when the node axis was padded
        col = kv * tkv + lax.broadcasted_iota(jnp.int32, (1, tkv), 1)
        s = jnp.where(col < n_real, s, NEG_INF)

    # ---- online softmax update ----
    m_prev = m_scr[...]
    m_new = jnp.maximum(m_prev, jnp.max(s, axis=-1, keepdims=True))
    alpha = jnp.exp(m_prev - m_new)
    p = jnp.exp(s - m_new)
    l_scr[...] = alpha * l_scr[...] + jnp.sum(p, axis=-1, keepdims=True)
    acc_scr[...] = alpha * acc_scr[...] + jnp.dot(
        p.astype(jnp.bfloat16), v, preferred_element_type=jnp.float32)
    m_scr[...] = m_new

    # ---- last kv tile: normalize and fold this head's Wo projection ----
    last_kv = kv == n_kv - 1

    @pl.when(last_kv)
    def _():
        ctx = acc_scr[...] * pl.reciprocal(l_scr[...], approx=True)
        out_scr[...] += jnp.dot(ctx.astype(jnp.bfloat16), wo_ref[0],
                                preferred_element_type=jnp.float32)

    @pl.when(last_kv & (h == n_heads - 1))
    def _():
        o_ref[0] = out_scr[...] + bo_ref[...]


# ------------------------------ pallas glue --------------------------------
def _round_up(x, m):
    return ((x + m - 1) // m) * m


def _pack_heads(w, b, num_heads, head_dim):
    """(C_in, H*D) weight / (1, H*D) bias -> per-head stacks (H, C_in, D) bf16 / (H, 1, D) f32."""
    c_in = w.shape[0]
    w_h = w.reshape(c_in, num_heads, head_dim).transpose(1, 0, 2).astype(jnp.bfloat16)
    b_h = b.reshape(1, num_heads, head_dim).transpose(1, 0, 2)
    return w_h, b_h


def _vmem_limit_bytes(tq, tkv, c_in, c_out, d):
    """Per-grid-step block bytes (x2 double buffer) + scratch + intermediates, per-chip cap."""
    blk_in = (tq * c_in * 4 + tkv * c_in * 4                  # z_q, z_kv (f32)
              + 3 * (c_in * d * 2 + d * 4)                    # wq/wk/wv (bf16) + biases
              + d * c_out * 2 + c_out * 4)                    # wo (bf16) + bo
    blk_out = tq * c_out * 4
    scratch = tq * d * 2 + 2 * tq * 4 + tq * d * 4 + tq * c_out * 4
    interm = 3 * tq * tkv * 4 + 2 * tkv * d * 2 + tq * d * 4  # s/p tiles + k/v + ctx
    want = 2 * (blk_in + blk_out) + scratch + interm + (2 << 20)
    try:
        cap = int(pltpu.get_tpu_info().vmem_capacity_bytes) - (24 << 20)
    except Exception:  # pragma: no cover - conservative fallback off-TPU / old jax
        cap = 96 << 20
    cap = max(cap, 32 << 20)
    return int(min(max(want, 16 << 20), cap))


def graph_transformer_conv_forward(params, z, *, out_channels, num_heads,
                                    tq=128, tkv=512):
    """Forward of GraphTransformerConv: z (B, N, C_in) -> (B, N, out_channels)."""
    B, N, C_in = z.shape
    H, D = num_heads, out_channels
    C_out = out_channels

    # ---- node-axis tiling: tq | tkv | n_pad (tkv forced to a multiple of tq) ----
    n8 = _round_up(N, 8)
    tq = _round_up(min(tq, n8), 8)
    tkv = _round_up(min(tkv, n8), 8)
    tkv = max(tq, (tkv // tq) * tq)
    n_pad = _round_up(N, tkv)
    nq, nkv = n_pad // tq, n_pad // tkv

    mask_kv = n_pad != N
    z_p = jnp.pad(z, ((0, 0), (0, n_pad - N), (0, 0))) if mask_kv else z

    # ---- per-head weight stacks (bf16 in HBM -> half the streamed DMA bytes) ----
    wq_h, bq_h = _pack_heads(params["wq"], params["bq"], H, D)
    wk_h, bk_h = _pack_heads(params["wk"], params["bk"], H, D)
    wv_h, bv_h = _pack_heads(params["wv"], params["bv"], H, D)
    wo_h = params["wo"].reshape(H, D, C_out).astype(jnp.bfloat16)
    bo = params["bo"]                                             # (1, C_out) f32

    inputs = (z_p, z_p, wq_h, bq_h, wk_h, bk_h, wv_h, bv_h, wo_h, bo)

    zq_spec = pl.BlockSpec((1, tq, C_in), lambda b, qi, h, kv: (b, qi, 0))
    zkv_spec = pl.BlockSpec((1, tkv, C_in), lambda b, qi, h, kv: (b, kv, 0))
    w_spec = pl.BlockSpec((1, C_in, D), lambda b, qi, h, kv: (h, 0, 0))
    bias_spec = pl.BlockSpec((1, 1, D), lambda b, qi, h, kv: (h, 0, 0))
    wo_spec = pl.BlockSpec((1, D, C_out), lambda b, qi, h, kv: (h, 0, 0))
    bo_spec = pl.BlockSpec((1, C_out), lambda b, qi, h, kv: (0, 0))

    in_specs = [zq_spec, zkv_spec,
                w_spec, bias_spec, w_spec, bias_spec, w_spec, bias_spec,
                wo_spec, bo_spec]
    out_spec = pl.BlockSpec((1, tq, C_out), lambda b, qi, h, kv: (b, qi, 0))

    kernel = functools.partial(_conv_flash_kernel,
                               scale=1.0 / (D ** 0.5),
                               n_real=N, tkv=tkv, mask_kv=mask_kv)

    out = pl.pallas_call(
        kernel,
        out_shape=jax.ShapeDtypeStruct((B, n_pad, C_out), jnp.float32),
        grid=(B, nq, H, nkv),
        in_specs=in_specs,
        out_specs=out_spec,
        scratch_shapes=[
            pltpu.VMEM((tq, D), jnp.bfloat16),    # q for the current head
            pltpu.VMEM((tq, 1), jnp.float32),     # running max m
            pltpu.VMEM((tq, 1), jnp.float32),     # running sum l
            pltpu.VMEM((tq, D), jnp.float32),     # unnormalized context acc
            pltpu.VMEM((tq, C_out), jnp.float32), # Wo-folded output accumulator
        ],
        compiler_params=pltpu.CompilerParams(
            dimension_semantics=("parallel", "parallel", "arbitrary", "arbitrary"),
            vmem_limit_bytes=_vmem_limit_bytes(tq, tkv, C_in, C_out, D),
        ),
    )(*inputs)

    return out[:, :N, :] if mask_kv else out


# ----------------------------- parameter init ------------------------------
def _linear_params(key, fan_in, fan_out):
    """nn.Linear default init: U(-1/sqrt(fan_in), 1/sqrt(fan_in)).
    W pre-transposed to (fan_in, fan_out) for lane-dense x @ W."""
    kw, kb = jax.random.split(key)
    bound = 1.0 / (fan_in ** 0.5)
    w = jax.random.uniform(kw, (fan_in, fan_out), jnp.float32, -bound, bound)
    b = jax.random.uniform(kb, (1, fan_out), jnp.float32, -bound, bound)
    return w, b


def init_graph_transformer_conv_params(key, in_channels, out_channels, num_heads):
    kq, kk, kv, ko = jax.random.split(key, 4)
    hd = out_channels * num_heads
    wq, bq = _linear_params(kq, in_channels, hd)
    wk, bk = _linear_params(kk, in_channels, hd)
    wv, bv = _linear_params(kv, in_channels, hd)
    wo, bo = _linear_params(ko, hd, out_channels)
    return dict(wq=wq, bq=bq, wk=wk, bk=bk, wv=wv, bv=bv, wo=wo, bo=bo)


# --------------------------- pure-JAX reference -----------------------------
def _reference_forward(params, z, *, out_channels, num_heads):
    B, N, _ = z.shape
    H, D = num_heads, out_channels
    q = (z @ params["wq"] + params["bq"]).reshape(B, N, H, D).transpose(0, 2, 1, 3)
    k = (z @ params["wk"] + params["bk"]).reshape(B, N, H, D).transpose(0, 2, 1, 3)
    v = (z @ params["wv"] + params["bv"]).reshape(B, N, H, D).transpose(0, 2, 1, 3)
    s = jnp.einsum("bhnd,bhmd->bhnm", q, k) / (D ** 0.5)
    a = jax.nn.softmax(s, axis=-1)
    ctx = jnp.einsum("bhnm,bhmd->bhnd", a, v).transpose(0, 2, 1, 3).reshape(B, N, H * D)
    return ctx @ params["wo"] + params["bo"]


# --------------------------------- main -------------------------------------
if __name__ == "__main__":
    B = 2
    N = 20            # nodes (pads to 24 -> exercises the kv masking path)
    in_channels = 32
    out_channels = 32
    num_heads = 2

    key = jax.random.PRNGKey(0)
    kp, kz = jax.random.split(key)
    params = init_graph_transformer_conv_params(kp, in_channels, out_channels, num_heads)
    z = jax.random.normal(kz, (B, N, in_channels), jnp.float32)

    # Small tiles so the multi-tile online-softmax / head-accumulation paths are exercised.
    out = graph_transformer_conv_forward(params, z,
                                         out_channels=out_channels,
                                         num_heads=num_heads,
                                         tq=8, tkv=8)
    out = jax.block_until_ready(out)

    ref = _reference_forward(params, z, out_channels=out_channels, num_heads=num_heads)
    assert out.shape == (B, N, out_channels)
    # bf16 MXU operands (f32 accumulation) -> tolerance looser than pure-f32 parity.
    assert jnp.allclose(out, ref, rtol=3e-2, atol=3e-2), "mismatch vs JAX reference"

    print("KERNEL_OK")
</pallas_src>

<mosaic_0001>
module attributes {stable_mosaic.version = 11 : i64} {
  func.func @_conv_flash_kernel(%arg0: i32, %arg1: i32, %arg2: i32, %arg3: i32, %arg4: memref<1x8x32xf32, #tpu.memory_space<vmem>>, %arg5: memref<1x8x32xf32, #tpu.memory_space<vmem>>, %arg6: memref<1x32x32xbf16, #tpu.memory_space<vmem>>, %arg7: memref<1x1x32xf32, #tpu.memory_space<vmem>>, %arg8: memref<1x32x32xbf16, #tpu.memory_space<vmem>>, %arg9: memref<1x1x32xf32, #tpu.memory_space<vmem>>, %arg10: memref<1x32x32xbf16, #tpu.memory_space<vmem>>, %arg11: memref<1x1x32xf32, #tpu.memory_space<vmem>>, %arg12: memref<1x32x32xbf16, #tpu.memory_space<vmem>>, %arg13: memref<1x32xf32, #tpu.memory_space<vmem>>, %arg14: memref<1x8x32xf32, #tpu.memory_space<vmem>>, %arg15: memref<8x32xbf16, #tpu.memory_space<vmem>>, %arg16: memref<8x1xf32, #tpu.memory_space<vmem>>, %arg17: memref<8x1xf32, #tpu.memory_space<vmem>>, %arg18: memref<8x32xf32, #tpu.memory_space<vmem>>, %arg19: memref<8x32xf32, #tpu.memory_space<vmem>>) attributes {dimension_semantics = [#tpu.dimension_semantics<parallel>, #tpu.dimension_semantics<parallel>, #tpu.dimension_semantics<arbitrary>, #tpu.dimension_semantics<arbitrary>], iteration_bounds = array<i64: 2, 3, 2, 3>, scalar_prefetch = 0 : i64, scratch_operands = 5 : i64, tpu.core_type = #tpu.core_type<tc>, window_params = [{transform_indices = @transform_0, window_bounds = array<i64: 1, 8, 32>}, {transform_indices = @transform_1, window_bounds = array<i64: 1, 8, 32>}, {transform_indices = @transform_2, window_bounds = array<i64: 1, 32, 32>}, {transform_indices = @transform_3, window_bounds = array<i64: 1, 1, 32>}, {transform_indices = @transform_4, window_bounds = array<i64: 1, 32, 32>}, {transform_indices = @transform_5, window_bounds = array<i64: 1, 1, 32>}, {transform_indices = @transform_6, window_bounds = array<i64: 1, 32, 32>}, {transform_indices = @transform_7, window_bounds = array<i64: 1, 1, 32>}, {transform_indices = @transform_8, window_bounds = array<i64: 1, 32, 32>}, {pipeline_mode = #tpu.pipeline_mode<synchronous>, transform_indices = @transform_9, window_bounds = array<i64: 1, 32>}, {transform_indices = @transform_10, window_bounds = array<i64: 1, 8, 32>}]} {
    %c0_i32 = arith.constant 0 : i32
    %0 = arith.cmpi eq, %arg2, %c0_i32 : i32
    %c0_i32_0 = arith.constant 0 : i32
    %1 = arith.cmpi eq, %arg3, %c0_i32_0 : i32
    %2 = arith.andi %0, %1 : i1
    %3 = arith.extui %2 : i1 to i32
    %c0_i32_1 = arith.constant 0 : i32
    %4 = arith.cmpi ne, %3, %c0_i32_1 : i32
    scf.if %4 {
      %cst_41 = arith.constant 0.000000e+00 : f32
      %71 = vector.broadcast %cst_41 : f32 to vector<8x32xf32>
      %c0_42 = arith.constant 0 : index
      %c0_43 = arith.constant 0 : index
      %72 = vector.load %arg19[%c0_42, %c0_43] : memref<8x32xf32, #tpu.memory_space<vmem>>, vector<8x32xf32>
      tpu.vector_store %arg19[%c0_42, %c0_43], %71 {strides = array<i32>} : memref<8x32xf32, #tpu.memory_space<vmem>>, vector<8x32xf32>,
    } else {
    }
    %c0_i32_2 = arith.constant 0 : i32
    %5 = arith.cmpi eq, %arg3, %c0_i32_2 : i32
    %6 = arith.extui %5 : i1 to i32
    %c0_i32_3 = arith.constant 0 : i32
    %7 = arith.cmpi ne, %6, %c0_i32_3 : i32
    scf.if %7 {
      %c0_41 = arith.constant 0 : index
      %c0_42 = arith.constant 0 : index
      %c0_43 = arith.constant 0 : index
      %71 = vector.load %arg4[%c0_41, %c0_42, %c0_43] : memref<1x8x32xf32, #tpu.memory_space<vmem>>, vector<1x8x32xf32>
      %72 = vector.shape_cast %71 : vector<1x8x32xf32> to vector<8x32xf32>
      %73 = arith.truncf %72 : vector<8x32xf32> to vector<8x32xbf16>
      %c0_44 = arith.constant 0 : index
      %c0_45 = arith.constant 0 : index
      %c0_46 = arith.constant 0 : index
      %74 = vector.load %arg6[%c0_44, %c0_45, %c0_46] : memref<1x32x32xbf16, #tpu.memory_space<vmem>>, vector<1x32x32xbf16>
      %75 = vector.shape_cast %74 : vector<1x32x32xbf16> to vector<32x32xbf16>
      %cst_47 = arith.constant dense<0.000000e+00> : vector<8x32xf32>
      %76 = tpu.matmul %73, %75, %cst_47 {dimension_numbers = #tpu.dot_dimension_numbers<[1], [0], [0], [1], [0, 0, 1, 1], [], []>} : vector<8x32xbf16>, vector<32x32xbf16>, vector<8x32xf32> -> vector<8x32xf32>
      %c0_48 = arith.constant 0 : index
      %c0_49 = arith.constant 0 : index
      %c0_50 = arith.constant 0 : index
      %77 = vector.load %arg7[%c0_48, %c0_49, %c0_50] : memref<1x1x32xf32, #tpu.memory_space<vmem>>, vector<1x1x32xf32>
      %78 = vector.shape_cast %77 : vector<1x1x32xf32> to vector<1x32xf32>
      %79 = vector.broadcast %78 : vector<1x32xf32> to vector<8x32xf32>
      %80 = arith.addf %76, %79 : vector<8x32xf32>
      %81 = arith.truncf %80 : vector<8x32xf32> to vector<8x32xbf16>
      %c0_51 = arith.constant 0 : index
      %c0_52 = arith.constant 0 : index
      %82 = vector.load %arg15[%c0_51, %c0_52] : memref<8x32xbf16, #tpu.memory_space<vmem>>, vector<8x32xbf16>
      tpu.vector_store %arg15[%c0_51, %c0_52], %81 {strides = array<i32>} : memref<8x32xbf16, #tpu.memory_space<vmem>>, vector<8x32xbf16>,
      %cst_53 = arith.constant -1.000000e+30 : f32
      %83 = vector.broadcast %cst_53 : f32 to vector<8x1xf32>
      %c0_54 = arith.constant 0 : index
      %c0_55 = arith.constant 0 : index
      %84 = vector.load %arg16[%c0_54, %c0_55] : memref<8x1xf32, #tpu.memory_space<vmem>>, vector<8x1xf32>
      tpu.vector_store %arg16[%c0_54, %c0_55], %83 {strides = array<i32>} : memref<8x1xf32, #tpu.memory_space<vmem>>, vector<8x1xf32>,
      %cst_56 = arith.constant 0.000000e+00 : f32
      %85 = vector.broadcast %cst_56 : f32 to vector<8x1xf32>
      %c0_57 = arith.constant 0 : index
      %c0_58 = arith.constant 0 : index
      %86 = vector.load %arg17[%c0_57, %c0_58] : memref<8x1xf32, #tpu.memory_space<vmem>>, vector<8x1xf32>
      tpu.vector_store %arg17[%c0_57, %c0_58], %85 {strides = array<i32>} : memref<8x1xf32, #tpu.memory_space<vmem>>, vector<8x1xf32>,
      %cst_59 = arith.constant 0.000000e+00 : f32
      %87 = vector.broadcast %cst_59 : f32 to vector<8x32xf32>
      %c0_60 = arith.constant 0 : index
      %c0_61 = arith.constant 0 : index
      %88 = vector.load %arg18[%c0_60, %c0_61] : memref<8x32xf32, #tpu.memory_space<vmem>>, vector<8x32xf32>
      tpu.vector_store %arg18[%c0_60, %c0_61], %87 {strides = array<i32>} : memref<8x32xf32, #tpu.memory_space<vmem>>, vector<8x32xf32>,
    } else {
    }
    %c0 = arith.constant 0 : index
    %c0_4 = arith.constant 0 : index
    %c0_5 = arith.constant 0 : index
    %8 = vector.load %arg5[%c0, %c0_4, %c0_5] : memref<1x8x32xf32, #tpu.memory_space<vmem>>, vector<1x8x32xf32>
    %9 = vector.shape_cast %8 : vector<1x8x32xf32> to vector<8x32xf32>
    %10 = arith.truncf %9 : vector<8x32xf32> to vector<8x32xbf16>
    %c0_6 = arith.constant 0 : index
    %c0_7 = arith.constant 0 : index
    %c0_8 = arith.constant 0 : index
    %11 = vector.load %arg8[%c0_6, %c0_7, %c0_8] : memref<1x32x32xbf16, #tpu.memory_space<vmem>>, vector<1x32x32xbf16>
    %12 = vector.shape_cast %11 : vector<1x32x32xbf16> to vector<32x32xbf16>
    %cst = arith.constant dense<0.000000e+00> : vector<8x32xf32>
    %13 = tpu.matmul %10, %12, %cst {dimension_numbers = #tpu.dot_dimension_numbers<[1], [0], [0], [1], [0, 0, 1, 1], [], []>} : vector<8x32xbf16>, vector<32x32xbf16>, vector<8x32xf32> -> vector<8x32xf32>
    %c0_9 = arith.constant 0 : index
    %c0_10 = arith.constant 0 : index
    %c0_11 = arith.constant 0 : index
    %14 = vector.load %arg9[%c0_9, %c0_10, %c0_11] : memref<1x1x32xf32, #tpu.memory_space<vmem>>, vector<1x1x32xf32>
    %15 = vector.shape_cast %14 : vector<1x1x32xf32> to vector<1x32xf32>
    %16 = vector.broadcast %15 : vector<1x32xf32> to vector<8x32xf32>
    %17 = arith.addf %13, %16 : vector<8x32xf32>
    %18 = arith.truncf %17 : vector<8x32xf32> to vector<8x32xbf16>
    %c0_12 = arith.constant 0 : index
    %c0_13 = arith.constant 0 : index
    %c0_14 = arith.constant 0 : index
    %19 = vector.load %arg10[%c0_12, %c0_13, %c0_14] : memref<1x32x32xbf16, #tpu.memory_space<vmem>>, vector<1x32x32xbf16>
    %20 = vector.shape_cast %19 : vector<1x32x32xbf16> to vector<32x32xbf16>
    %cst_15 = arith.constant dense<0.000000e+00> : vector<8x32xf32>
    %21 = tpu.matmul %10, %20, %cst_15 {dimension_numbers = #tpu.dot_dimension_numbers<[1], [0], [0], [1], [0, 0, 1, 1], [], []>} : vector<8x32xbf16>, vector<32x32xbf16>, vector<8x32xf32> -> vector<8x32xf32>
    %c0_16 = arith.constant 0 : index
    %c0_17 = arith.constant 0 : index
    %c0_18 = arith.constant 0 : index
    %22 = vector.load %arg11[%c0_16, %c0_17, %c0_18] : memref<1x1x32xf32, #tpu.memory_space<vmem>>, vector<1x1x32xf32>
    %23 = vector.shape_cast %22 : vector<1x1x32xf32> to vector<1x32xf32>
    %24 = vector.broadcast %23 : vector<1x32xf32> to vector<8x32xf32>
    %25 = arith.addf %21, %24 : vector<8x32xf32>
    %26 = arith.truncf %25 : vector<8x32xf32> to vector<8x32xbf16>
    %c0_19 = arith.constant 0 : index
    %c0_20 = arith.constant 0 : index
    %27 = vector.load %arg15[%c0_19, %c0_20] : memref<8x32xbf16, #tpu.memory_space<vmem>>, vector<8x32xbf16>
    %cst_21 = arith.constant dense<0.000000e+00> : vector<8x8xf32>
    %28 = tpu.matmul %27, %18, %cst_21 {dimension_numbers = #tpu.dot_dimension_numbers<[1], [1], [0], [0], [0, 0, 1, 0], [], []>} : vector<8x32xbf16>, vector<8x32xbf16>, vector<8x8xf32> -> vector<8x8xf32>
    %cst_22 = arith.constant 0.176776692 : f32
    %29 = vector.broadcast %cst_22 : f32 to vector<8x8xf32>
    %30 = arith.mulf %28, %29 : vector<8x8xf32>
    %c8_i32 = arith.constant 8 : i32
    %31 = arith.muli %arg3, %c8_i32 : i32
    %32 = tpu.iota {dimensions = array<i32: 1>} : vector<1x8xi32>
    %33 = vector.broadcast %31 : i32 to vector<1x8xi32>
    %34 = arith.addi %33, %32 : vector<1x8xi32>
    %c20_i32 = arith.constant 20 : i32
    %35 = vector.broadcast %c20_i32 : i32 to vector<1x8xi32>
    %36 = arith.cmpi slt, %34, %35 : vector<1x8xi32>
    %cst_23 = arith.constant -1.000000e+30 : f32
    %37 = vector.shape_cast %36 : vector<1x8xi1> to vector<1x8xi1>
    %38 = vector.broadcast %37 : vector<1x8xi1> to vector<8x8xi1>
    %39 = vector.broadcast %cst_23 : f32 to vector<8x8xf32>
    %40 = arith.select %38, %30, %39 : vector<8x8xi1>, vector<8x8xf32>
    %c0_24 = arith.constant 0 : index
    %c0_25 = arith.constant 0 : index
    %41 = vector.load %arg16[%c0_24, %c0_25] : memref<8x1xf32, #tpu.memory_space<vmem>>, vector<8x1xf32>
    %cst_26 = arith.constant dense<0xFF800000> : vector<8xf32>
    %42 = vector.multi_reduction <maximumf>, %40, %cst_26 [1] : vector<8x8xf32> to vector<8xf32>
    %43 = vector.shape_cast %42 : vector<8xf32> to vector<8x1xf32>
    %44 = arith.maximumf %41, %43 : vector<8x1xf32>
    %45 = arith.subf %41, %44 : vector<8x1xf32>
    %46 = math.exp %45 : vector<8x1xf32>
    %47 = vector.broadcast %44 : vector<8x1xf32> to vector<8x8xf32>
    %48 = arith.subf %40, %47 : vector<8x8xf32>
    %49 = math.exp %48 : vector<8x8xf32>
    %c0_27 = arith.constant 0 : index
    %c0_28 = arith.constant 0 : index
    %50 = vector.load %arg17[%c0_27, %c0_28] : memref<8x1xf32, #tpu.memory_space<vmem>>, vector<8x1xf32>
    %51 = arith.mulf %46, %50 : vector<8x1xf32>
    %cst_29 = arith.constant dense<0.000000e+00> : vector<8xf32>
    %52 = vector.multi_reduction <add>, %49, %cst_29 [1] : vector<8x8xf32> to vector<8xf32>
    %53 = vector.shape_cast %52 : vector<8xf32> to vector<8x1xf32>
    %54 = arith.addf %51, %53 : vector<8x1xf32>
    %c0_30 = arith.constant 0 : index
    %c0_31 = arith.constant 0 : index
    %55 = vector.load %arg17[%c0_30, %c0_31] : memref<8x1xf32, #tpu.memory_space<vmem>>, vector<8x1xf32>
    tpu.vector_store %arg17[%c0_30, %c0_31], %54 {strides = array<i32>} : memref<8x1xf32, #tpu.memory_space<vmem>>, vector<8x1xf32>,
    %c0_32 = arith.constant 0 : index
    %c0_33 = arith.constant 0 : index
    %56 = vector.load %arg18[%c0_32, %c0_33] : memref<8x32xf32, #tpu.memory_space<vmem>>, vector<8x32xf32>
    %57 = vector.broadcast %46 : vector<8x1xf32> to vector<8x32xf32>
    %58 = arith.mulf %57, %56 : vector<8x32xf32>
    %59 = arith.truncf %49 : vector<8x8xf32> to vector<8x8xbf16>
    %cst_34 = arith.constant dense<0.000000e+00> : vector<8x32xf32>
    %60 = tpu.matmul %59, %26, %cst_34 {dimension_numbers = #tpu.dot_dimension_numbers<[1], [0], [0], [1], [0, 0, 1, 1], [], []>} : vector<8x8xbf16>, vector<8x32xbf16>, vector<8x32xf32> -> vector<8x32xf32>
    %61 = arith.addf %58, %60 : vector<8x32xf32>
    %c0_35 = arith.constant 0 : index
    %c0_36 = arith.constant 0 : index
    %62 = vector.load %arg18[%c0_35, %c0_36] : memref<8x32xf32, #tpu.memory_space<vmem>>, vector<8x32xf32>
    tpu.vector_store %arg18[%c0_35, %c0_36], %61 {strides = array<i32>} : memref<8x32xf32, #tpu.memory_space<vmem>>, vector<8x32xf32>,
    %c0_37 = arith.constant 0 : index
    %c0_38 = arith.constant 0 : index
    %63 = vector.load %arg16[%c0_37, %c0_38] : memref<8x1xf32, #tpu.memory_space<vmem>>, vector<8x1xf32>
    tpu.vector_store %arg16[%c0_37, %c0_38], %44 {strides = array<i32>} : memref<8x1xf32, #tpu.memory_space<vmem>>, vector<8x1xf32>,
    %c2_i32 = arith.constant 2 : i32
    %64 = arith.cmpi eq, %arg3, %c2_i32 : i32
    %65 = arith.extui %64 : i1 to i32
    %c0_i32_39 = arith.constant 0 : i32
    %66 = arith.cmpi ne, %65, %c0_i32_39 : i32
    scf.if %66 {
      %c0_41 = arith.constant 0 : index
      %c0_42 = arith.constant 0 : index
      %71 = vector.load %arg18[%c0_41, %c0_42] : memref<8x32xf32, #tpu.memory_space<vmem>>, vector<8x32xf32>
      %c0_43 = arith.constant 0 : index
      %c0_44 = arith.constant 0 : index
      %72 = vector.load %arg17[%c0_43, %c0_44] : memref<8x1xf32, #tpu.memory_space<vmem>>, vector<8x1xf32>
      %73 = tpu.reciprocal %72 {approx = true} : vector<8x1xf32> -> vector<8x1xf32>
      %74 = vector.broadcast %73 : vector<8x1xf32> to vector<8x32xf32>
      %75 = arith.mulf %71, %74 : vector<8x32xf32>
      %c0_45 = arith.constant 0 : index
      %c0_46 = arith.constant 0 : index
      %76 = vector.load %arg19[%c0_45, %c0_46] : memref<8x32xf32, #tpu.memory_space<vmem>>, vector<8x32xf32>
      %77 = arith.truncf %75 : vector<8x32xf32> to vector<8x32xbf16>
      %c0_47 = arith.constant 0 : index
      %c0_48 = arith.constant 0 : index
      %c0_49 = arith.constant 0 : index
      %78 = vector.load %arg12[%c0_47, %c0_48, %c0_49] : memref<1x32x32xbf16, #tpu.memory_space<vmem>>, vector<1x32x32xbf16>
      %79 = vector.shape_cast %78 : vector<1x32x32xbf16> to vector<32x32xbf16>
      %cst_50 = arith.constant dense<0.000000e+00> : vector<8x32xf32>
      %80 = tpu.matmul %77, %79, %cst_50 {dimension_numbers = #tpu.dot_dimension_numbers<[1], [0], [0], [1], [0, 0, 1, 1], [], []>} : vector<8x32xbf16>, vector<32x32xbf16>, vector<8x32xf32> -> vector<8x32xf32>
      %81 = arith.addf %76, %80 : vector<8x32xf32>
      %c0_51 = arith.constant 0 : index
      %c0_52 = arith.constant 0 : index
      %82 = vector.load %arg19[%c0_51, %c0_52] : memref<8x32xf32, #tpu.memory_space<vmem>>, vector<8x32xf32>
      tpu.vector_store %arg19[%c0_51, %c0_52], %81 {strides = array<i32>} : memref<8x32xf32, #tpu.memory_space<vmem>>, vector<8x32xf32>,
    } else {
    }
    %c1_i32 = arith.constant 1 : i32
    %67 = arith.cmpi eq, %arg2, %c1_i32 : i32
    %68 = arith.andi %64, %67 : i1
    %69 = arith.extui %68 : i1 to i32
    %c0_i32_40 = arith.constant 0 : i32
    %70 = arith.cmpi ne, %69, %c0_i32_40 : i32
    scf.if %70 {
      %c0_41 = arith.constant 0 : index
      %c0_42 = arith.constant 0 : index
      %71 = vector.load %arg19[%c0_41, %c0_42] : memref<8x32xf32, #tpu.memory_space<vmem>>, vector<8x32xf32>
      %c0_43 = arith.constant 0 : index
      %c0_44 = arith.constant 0 : index
      %72 = vector.load %arg13[%c0_43, %c0_44] : memref<1x32xf32, #tpu.memory_space<vmem>>, vector<1x32xf32>
      %73 = vector.broadcast %72 : vector<1x32xf32> to vector<8x32xf32>
      %74 = arith.addf %71, %73 : vector<8x32xf32>
      %c0_45 = arith.constant 0 : index
      %c0_46 = arith.constant 0 : index
      %c0_47 = arith.constant 0 : index
      %75 = vector.load %arg14[%c0_45, %c0_46, %c0_47] : memref<1x8x32xf32, #tpu.memory_space<vmem>>, vector<1x8x32xf32>
      %76 = vector.shape_cast %75 : vector<1x8x32xf32> to vector<8x32xf32>
      %77 = vector.shape_cast %74 : vector<8x32xf32> to vector<1x8x32xf32>
      tpu.vector_store %arg14[%c0_45, %c0_46, %c0_47], %77 {strides = array<i32>} : memref<1x8x32xf32, #tpu.memory_space<vmem>>, vector<1x8x32xf32>,
    } else {
    }
    return
  }
  func.func @transform_0(%arg0: i32, %arg1: i32, %arg2: i32, %arg3: i32) -> (i32, i32, i32) {
    %c0_i32 = arith.constant 0 : i32
    %c0_i32_0 = arith.constant 0 : i32
    return %arg0, %arg1, %c0_i32 : i32, i32, i32
  }
  func.func @transform_1(%arg0: i32, %arg1: i32, %arg2: i32, %arg3: i32) -> (i32, i32, i32) {
    %c0_i32 = arith.constant 0 : i32
    %c0_i32_0 = arith.constant 0 : i32
    return %arg0, %arg3, %c0_i32 : i32, i32, i32
  }
  func.func @transform_2(%arg0: i32, %arg1: i32, %arg2: i32, %arg3: i32) -> (i32, i32, i32) {
    %c0_i32 = arith.constant 0 : i32
    %c0_i32_0 = arith.constant 0 : i32
    %c0_i32_1 = arith.constant 0 : i32
    return %arg2, %c0_i32, %c0_i32_0 : i32, i32, i32
  }
  func.func @transform_3(%arg0: i32, %arg1: i32, %arg2: i32, %arg3: i32) -> (i32, i32, i32) {
    %c0_i32 = arith.constant 0 : i32
    %c0_i32_0 = arith.constant 0 : i32
    %c0_i32_1 = arith.constant 0 : i32
    return %arg2, %c0_i32, %c0_i32_0 : i32, i32, i32
  }
  func.func @transform_4(%arg0: i32, %arg1: i32, %arg2: i32, %arg3: i32) -> (i32, i32, i32) {
    %c0_i32 = arith.constant 0 : i32
    %c0_i32_0 = arith.constant 0 : i32
    %c0_i32_1 = arith.constant 0 : i32
    return %arg2, %c0_i32, %c0_i32_0 : i32, i32, i32
  }
  func.func @transform_5(%arg0: i32, %arg1: i32, %arg2: i32, %arg3: i32) -> (i32, i32, i32) {
    %c0_i32 = arith.constant 0 : i32
    %c0_i32_0 = arith.constant 0 : i32
    %c0_i32_1 = arith.constant 0 : i32
    return %arg2, %c0_i32, %c0_i32_0 : i32, i32, i32
  }
  func.func @transform_6(%arg0: i32, %arg1: i32, %arg2: i32, %arg3: i32) -> (i32, i32, i32) {
    %c0_i32 = arith.constant 0 : i32
    %c0_i32_0 = arith.constant 0 : i32
    %c0_i32_1 = arith.constant 0 : i32
    return %arg2, %c0_i32, %c0_i32_0 : i32, i32, i32
  }
  func.func @transform_7(%arg0: i32, %arg1: i32, %arg2: i32, %arg3: i32) -> (i32, i32, i32) {
    %c0_i32 = arith.constant 0 : i32
    %c0_i32_0 = arith.constant 0 : i32
    %c0_i32_1 = arith.constant 0 : i32
    return %arg2, %c0_i32, %c0_i32_0 : i32, i32, i32
  }
  func.func @transform_8(%arg0: i32, %arg1: i32, %arg2: i32, %arg3: i32) -> (i32, i32, i32) {
    %c0_i32 = arith.constant 0 : i32
    %c0_i32_0 = arith.constant 0 : i32
    %c0_i32_1 = arith.constant 0 : i32
    return %arg2, %c0_i32, %c0_i32_0 : i32, i32, i32
  }
  func.func @transform_9(%arg0: i32, %arg1: i32, %arg2: i32, %arg3: i32) -> (i32, i32) {
    %c0_i32 = arith.constant 0 : i32
    %c0_i32_0 = arith.constant 0 : i32
    %c0_i32_1 = arith.constant 0 : i32
    return %c0_i32, %c0_i32_0 : i32, i32
  }
  func.func @transform_10(%arg0: i32, %arg1: i32, %arg2: i32, %arg3: i32) -> (i32, i32, i32) {
    %c0_i32 = arith.constant 0 : i32
    %c0_i32_0 = arith.constant 0 : i32
    return %arg0, %arg1, %c0_i32 : i32, i32, i32
  }
}

</mosaic_0001>

<llo_original>
// kernel: tpu_custom_call.1
$region0: #{tpu_custom_call.1}
  #allocation0 [shape = 'u32[]', space=smem, size = 0x4, offset = 0x4, fixed_abs, tag = 'smem constant byte address 0x4 - core index']
  #allocation1 [shape = 'u32[144,128]{1,0:T(1,128)}', space=vmem, size = 0x12000, scoped, tag = 'internal scratch']
  #allocation2 [shape = 'bf16[8,32]{1,0:T(8,128)(2,1)}', space=vmem, size = 0x800, scoped, tag = 'scratch operand']
  #allocation3 [shape = 'f32[8,1]{1,0:T(8,128)}', space=vmem, size = 0x1000, scoped, tag = 'scratch operand']
  #allocation4 [shape = 'f32[8,1]{1,0:T(8,128)}', space=vmem, size = 0x1000, scoped, tag = 'scratch operand']
  #allocation5 [shape = 'f32[8,32]{1,0:T(8,128)}', space=vmem, size = 0x1000, scoped, tag = 'scratch operand']
  #allocation6 [shape = 'f32[8,32]{1,0:T(8,128)}', space=vmem, size = 0x1000, scoped, tag = 'scratch operand']
  %s0 = inlined_call_operand.hbm [shape: f32[2,24,32], index: 0, kind: input, shape index: {}]
  %s1 = inlined_call_operand.hbm [shape: f32[2,24,32], index: 1, kind: input, shape index: {}]
  %s2 = inlined_call_operand.hbm [shape: bf16[2,32,32], index: 2, kind: input, shape index: {}]
  %s3 = inlined_call_operand.vmem [shape: f32[2,1,32], index: 3, kind: input, shape index: {}]
  %s4 = inlined_call_operand.hbm [shape: bf16[2,32,32], index: 4, kind: input, shape index: {}]
  %s5 = inlined_call_operand.vmem [shape: f32[2,1,32], index: 5, kind: input, shape index: {}]
  %s6 = inlined_call_operand.hbm [shape: bf16[2,32,32], index: 6, kind: input, shape index: {}]
  %s7 = inlined_call_operand.vmem [shape: f32[2,1,32], index: 7, kind: input, shape index: {}]
  %s8 = inlined_call_operand.hbm [shape: bf16[2,32,32], index: 8, kind: input, shape index: {}]
  %s9 = inlined_call_operand.vmem [shape: f32[1,32], index: 9, kind: input, shape index: {}]
  %s10 = inlined_call_operand.hbm [shape: f32[2,24,32], index: 10, kind: output, shape index: {}]
  %s11 = sld [smem:[#allocation0]]
  $region113: #{tpu_custom_call.1} parent=0
    _
  %s13 = ssub.s32 1, %s11
  %s14 = scalar_select 0, %s13, %s11
  $region1: #{tpu_custom_call.1} parent=0
    #allocation7 [shape = 'u8[8192]{0}', space=vmem, size = 0x2000, scoped, tag = 'input window, operand 0']
    #allocation8 [shape = 's32[2]{0}', space=sflag, size = 0x8, scoped, tag = 'scoped memory for tpu_custom_call.1']
    #allocation9 [shape = 's32[2]{0}', space=sflag, size = 0x8, scoped, tag = 'scoped memory for tpu_custom_call.1']
    #allocation10 [shape = 'u8[8192]{0}', space=vmem, size = 0x2000, scoped, tag = 'input window, operand 1']
    #allocation11 [shape = 's32[2]{0}', space=sflag, size = 0x8, scoped, tag = 'scoped memory for tpu_custom_call.1']
    #allocation12 [shape = 'u8[16384]{0}', space=vmem, size = 0x4000, scoped, tag = 'input window, operand 2']
    #allocation13 [shape = 'u8[16384]{0}', space=vmem, size = 0x4000, scoped, tag = 'input window, operand 4']
    #allocation14 [shape = 's32[2]{0}', space=sflag, size = 0x8, scoped, tag = 'scoped memory for tpu_custom_call.1']
    #allocation15 [shape = 'u8[16384]{0}', space=vmem, size = 0x4000, scoped, tag = 'input window, operand 6']
    #allocation16 [shape = 'u8[16384]{0}', space=vmem, size = 0x4000, scoped, tag = 'input window, operand 8']
    #allocation17 [shape = 's32[2]{0}', space=sflag, size = 0x8, scoped, tag = 'scoped memory for tpu_custom_call.1']
    #allocation18 [shape = 'u8[8192]{0}', space=vmem, size = 0x2000, scoped, tag = 'output window, operand 0']
    %15 = vsyncpa [#allocation8], 0
    %s16 = scalar_lea.sflag [#allocation8], 1
    %17 = vsyncpa %s16, 0
    %18 = vsyncpa [#allocation11], 0
    %s19 = scalar_lea.sflag [#allocation11], 1
    %20 = vsyncpa %s19, 0
    %21 = vsyncpa [#allocation14], 0
    %s22 = scalar_lea.sflag [#allocation14], 1
    %23 = vsyncpa %s22, 0
    %24 = vsyncpa [#allocation17], 0
    %s25 = scalar_lea.sflag [#allocation17], 1
    %26 = vsyncpa %s25, 0
    %27 = vsyncpa [#allocation9], 0
    %s28 = scalar_lea.sflag [#allocation9], 1
    %29 = vsyncpa %s28, 0
    loop: start=0, step=1, limit=38
    $region2: #{tpu_custom_call.1} parent=1 // loop_pre_header
      _
    $region3: #{tpu_custom_call.1} parent=1 // loop_header
      %s31 = sphi 0, %s35
      %p32 = scmp.ge.s32.totalorder %s31, 38
      %s38 = sphi 0, %s64
      %s39 = sphi 0, %s60
      %s40 = sphi 0, %s56
      %s41 = sphi 0, %s52
      %s42 = sphi 0, %s38
      %s43 = sphi 0, %s39
      %s44 = sphi 0, %s40
      %s45 = sphi 0, %s41
      %s46 = sphi 0, %s42
      %s47 = sphi 0, %s43
      %s48 = sphi 0, %s44
      %s49 = sphi 0, %s45
      %s69 = sphi 0, %s71
      %s72 = sphi 0, %s69
      %s73 = sphi 0, %s72
      %s89 = sphi 0, %s73
      %s97 = sphi 0, %s99
      %s100 = sphi 0, %s97
      %s101 = sphi 0, %s100
      %s117 = sphi 0, %s101
      %s123 = sphi 0, %s125
      %s126 = sphi 0, %s123
      %s127 = sphi 0, %s126
      %s143 = sphi 0, %s127
      %s149 = sphi 0, %s151
      %s152 = sphi 0, %s149
      %s153 = sphi 0, %s152
      %s169 = sphi 0, %s153
      %s175 = sphi 0, %s177
      %s178 = sphi 0, %s175
      %s179 = sphi 0, %s178
      %s195 = sphi 0, %s179
      %s201 = sphi 0, %s203
      %s204 = sphi 0, %s201
      %s205 = sphi 0, %s204
      %s221 = sphi 0, %s205
      %s227 = sphi 0, %s229
      %s230 = sphi 0, %s227
      %s231 = sphi 0, %s230
      %s247 = sphi 0, %s231
      %s253 = sphi 0, %s255
      %s256 = sphi 0, %s253
      %s257 = sphi 0, %s256
      %s273 = sphi 0, %s257
      %s279 = sphi 0, %s281
      %s282 = sphi 0, %s279
      %s283 = sphi 0, %s282
      %s299 = sphi 0, %s283
      %s303 = sphi 0, %s303
      %s305 = sphi 0, %s303
      %s306 = sphi 0, %s305
      %s320 = sphi 0, %s306
      %s328 = sphi 0, %s330
      %s331 = sphi 0, %s328
      %s332 = sphi 0, %s331
      %s348 = sphi 0, %s332
    $region4: #{tpu_custom_call.1} parent=1 // loop_header_branch
      %34 = sbr.rel (%p32) target = $region8
    $region5: #{tpu_custom_call.1} parent=1 // loop_body
      %s36 = ssub.s32 %s31, 1
      %s37 = ssub.s32 %s31, 2
      %s50 = sadd.s32 1, %s41
      %p51 = scmp.ge.s32.totalorder %s50, 3
      %s52 = scalar_select %p51, 0, %s50
      %s53 = sadd.s32 1, %s40
      %s54 = scalar_select %p51, %s53, %s40
      %p55 = scmp.ge.s32.totalorder %s54, 2
      %s56 = scalar_select %p55, 0, %s54
      %s57 = sadd.s32 1, %s39
      %s58 = scalar_select %p55, %s57, %s39
      %p59 = scmp.ge.s32.totalorder %s58, 3
      %s60 = scalar_select %p59, 0, %s58
      %s61 = sadd.s32 1, %s38
      %s62 = scalar_select %p59, %s61, %s38
      %p63 = scmp.ge.s32.totalorder %s62, 2
      %s64 = scalar_select %p63, 0, %s62
      %s65 = ssub.s32 %s38, %s64
      %s66 = ssub.s32 %s39, %s60
      %s67 = sor.u32 %s65, %s66
      %p68 = scmp.eq.s32.totalorder %s67, 0
      %s70 = sadd.s32 %s69, 1
      %s71 = scalar_select %p68, %s69, %s70
      %p74 = pneg %p68
      %p75 = scmp.eq.s32.totalorder %s31, 35
      %p76 = por %p74, %p75
      %p77 = scmp.ne.s32.totalorder %s69, %s72
      %p78 = scmp.eq.s32.totalorder %s31, 0
      %p79 = por %p77, %p78
      %p80 = scmp.ne.s32.totalorder %s69, %s72
      %p81 = scmp.eq.s32.totalorder %s36, 35
      %p82 = por %p80, %p81
      %p83 = scmp.ne.s32.totalorder %s72, %s73
      %p84 = scmp.eq.s32.totalorder %s36, 0
      %p85 = por %p83, %p84
      %p86 = scmp.ne.s32.totalorder %s72, %s73
      %p87 = scmp.eq.s32.totalorder %s37, 35
      %p88 = por %p86, %p87
      %p90 = scmp.ne.s32.totalorder %s73, %s89
      %p91 = scmp.eq.s32.totalorder %s37, 0
      %p92 = por %p90, %p91
      %s93 = ssub.s32 %s38, %s64
      %s94 = ssub.s32 %s41, %s52
      %s95 = sor.u32 %s93, %s94
      %p96 = scmp.eq.s32.totalorder %s95, 0
      %s98 = sadd.s32 %s97, 1
      %s99 = scalar_select %p96, %s97, %s98
      %p102 = pneg %p96
      %p103 = scmp.eq.s32.totalorder %s31, 35
      %p104 = por %p102, %p103
      %p105 = scmp.ne.s32.totalorder %s97, %s100
      %p106 = scmp.eq.s32.totalorder %s31, 0
      %p107 = por %p105, %p106
      %p108 = scmp.ne.s32.totalorder %s97, %s100
      %p109 = scmp.eq.s32.totalorder %s36, 35
      %p110 = por %p108, %p109
      %p111 = scmp.ne.s32.totalorder %s100, %s101
      %p112 = scmp.eq.s32.totalorder %s36, 0
      %p113 = por %p111, %p112
      %p114 = scmp.ne.s32.totalorder %s100, %s101
      %p115 = scmp.eq.s32.totalorder %s37, 35
      %p116 = por %p114, %p115
      %p118 = scmp.ne.s32.totalorder %s101, %s117
      %p119 = scmp.eq.s32.totalorder %s37, 0
      %p120 = por %p118, %p119
      %s121 = ssub.s32 %s40, %s56
      %p122 = scmp.eq.s32.totalorder %s121, 0
      %s124 = sadd.s32 %s123, 1
      %s125 = scalar_select %p122, %s123, %s124
      %p128 = pneg %p122
      %p129 = scmp.eq.s32.totalorder %s31, 35
      %p130 = por %p128, %p129
      %p131 = scmp.ne.s32.totalorder %s123, %s126
      %p132 = scmp.eq.s32.totalorder %s31, 0
      %p133 = por %p131, %p132
      %p134 = scmp.ne.s32.totalorder %s123, %s126
      %p135 = scmp.eq.s32.totalorder %s36, 35
      %p136 = por %p134, %p135
      %p137 = scmp.ne.s32.totalorder %s126, %s127
      %p138 = scmp.eq.s32.totalorder %s36, 0
      %p139 = por %p137, %p138
      %p140 = scmp.ne.s32.totalorder %s126, %s127
      %p141 = scmp.eq.s32.totalorder %s37, 35
      %p142 = por %p140, %p141
      %p144 = scmp.ne.s32.totalorder %s127, %s143
      %p145 = scmp.eq.s32.totalorder %s37, 0
      %p146 = por %p144, %p145
      %s147 = ssub.s32 %s40, %s56
      %p148 = scmp.eq.s32.totalorder %s147, 0
      %s150 = sadd.s32 %s149, 1
      %s151 = scalar_select %p148, %s149, %s150
      %p154 = pneg %p148
      %p155 = scmp.eq.s32.totalorder %s31, 35
      %p156 = por %p154, %p155
      %p157 = scmp.ne.s32.totalorder %s149, %s152
      %p158 = scmp.eq.s32.totalorder %s31, 0
      %p159 = por %p157, %p158
      %p160 = scmp.ne.s32.totalorder %s149, %s152
      %p161 = scmp.eq.s32.totalorder %s36, 35
      %p162 = por %p160, %p161
      %p163 = scmp.ne.s32.totalorder %s152, %s153
      %p164 = scmp.eq.s32.totalorder %s36, 0
      %p165 = por %p163, %p164
      %p166 = scmp.ne.s32.totalorder %s152, %s153
      %p167 = scmp.eq.s32.totalorder %s37, 35
      %p168 = por %p166, %p167
      %p170 = scmp.ne.s32.totalorder %s153, %s169
      %p171 = scmp.eq.s32.totalorder %s37, 0
      %p172 = por %p170, %p171
      %s173 = ssub.s32 %s40, %s56
      %p174 = scmp.eq.s32.totalorder %s173, 0
      %s176 = sadd.s32 %s175, 1
      %s177 = scalar_select %p174, %s175, %s176
      %p180 = pneg %p174
      %p181 = scmp.eq.s32.totalorder %s31, 35
      %p182 = por %p180, %p181
      %p183 = scmp.ne.s32.totalorder %s175, %s178
      %p184 = scmp.eq.s32.totalorder %s31, 0
      %p185 = por %p183, %p184
      %p186 = scmp.ne.s32.totalorder %s175, %s178
      %p187 = scmp.eq.s32.totalorder %s36, 35
      %p188 = por %p186, %p187
      %p189 = scmp.ne.s32.totalorder %s178, %s179
      %p190 = scmp.eq.s32.totalorder %s36, 0
      %p191 = por %p189, %p190
      %p192 = scmp.ne.s32.totalorder %s178, %s179
      %p193 = scmp.eq.s32.totalorder %s37, 35
      %p194 = por %p192, %p193
      %p196 = scmp.ne.s32.totalorder %s179, %s195
      %p197 = scmp.eq.s32.totalorder %s37, 0
      %p198 = por %p196, %p197
      %s199 = ssub.s32 %s40, %s56
      %p200 = scmp.eq.s32.totalorder %s199, 0
      %s202 = sadd.s32 %s201, 1
      %s203 = scalar_select %p200, %s201, %s202
      %p206 = pneg %p200
      %p207 = scmp.eq.s32.totalorder %s31, 35
      %p208 = por %p206, %p207
      %p209 = scmp.ne.s32.totalorder %s201, %s204
      %p210 = scmp.eq.s32.totalorder %s31, 0
      %p211 = por %p209, %p210
      %p212 = scmp.ne.s32.totalorder %s201, %s204
      %p213 = scmp.eq.s32.totalorder %s36, 35
      %p214 = por %p212, %p213
      %p215 = scmp.ne.s32.totalorder %s204, %s205
      %p216 = scmp.eq.s32.totalorder %s36, 0
      %p217 = por %p215, %p216
      %p218 = scmp.ne.s32.totalorder %s204, %s205
      %p219 = scmp.eq.s32.totalorder %s37, 35
      %p220 = por %p218, %p219
      %p222 = scmp.ne.s32.totalorder %s205, %s221
      %p223 = scmp.eq.s32.totalorder %s37, 0
      %p224 = por %p222, %p223
      %s225 = ssub.s32 %s40, %s56
      %p226 = scmp.eq.s32.totalorder %s225, 0
      %s228 = sadd.s32 %s227, 1
      %s229 = scalar_select %p226, %s227, %s228
      %p232 = pneg %p226
      %p233 = scmp.eq.s32.totalorder %s31, 35
      %p234 = por %p232, %p233
      %p235 = scmp.ne.s32.totalorder %s227, %s230
      %p236 = scmp.eq.s32.totalorder %s31, 0
      %p237 = por %p235, %p236
      %p238 = scmp.ne.s32.totalorder %s227, %s230
      %p239 = scmp.eq.s32.totalorder %s36, 35
      %p240 = por %p238, %p239
      %p241 = scmp.ne.s32.totalorder %s230, %s231
      %p242 = scmp.eq.s32.totalorder %s36, 0
      %p243 = por %p241, %p242
      %p244 = scmp.ne.s32.totalorder %s230, %s231
      %p245 = scmp.eq.s32.totalorder %s37, 35
      %p246 = por %p244, %p245
      %p248 = scmp.ne.s32.totalorder %s231, %s247
      %p249 = scmp.eq.s32.totalorder %s37, 0
      %p250 = por %p248, %p249
      %s251 = ssub.s32 %s40, %s56
      %p252 = scmp.eq.s32.totalorder %s251, 0
      %s254 = sadd.s32 %s253, 1
      %s255 = scalar_select %p252, %s253, %s254
      %p258 = pneg %p252
      %p259 = scmp.eq.s32.totalorder %s31, 35
      %p260 = por %p258, %p259
      %p261 = scmp.ne.s32.totalorder %s253, %s256
      %p262 = scmp.eq.s32.totalorder %s31, 0
      %p263 = por %p261, %p262
      %p264 = scmp.ne.s32.totalorder %s253, %s256
      %p265 = scmp.eq.s32.totalorder %s36, 35
      %p266 = por %p264, %p265
      %p267 = scmp.ne.s32.totalorder %s256, %s257
      %p268 = scmp.eq.s32.totalorder %s36, 0
      %p269 = por %p267, %p268
      %p270 = scmp.ne.s32.totalorder %s256, %s257
      %p271 = scmp.eq.s32.totalorder %s37, 35
      %p272 = por %p270, %p271
      %p274 = scmp.ne.s32.totalorder %s257, %s273
      %p275 = scmp.eq.s32.totalorder %s37, 0
      %p276 = por %p274, %p275
      %s277 = ssub.s32 %s40, %s56
      %p278 = scmp.eq.s32.totalorder %s277, 0
      %s280 = sadd.s32 %s279, 1
      %s281 = scalar_select %p278, %s279, %s280
      %p284 = pneg %p278
      %p285 = scmp.eq.s32.totalorder %s31, 35
      %p286 = por %p284, %p285
      %p287 = scmp.ne.s32.totalorder %s279, %s282
      %p288 = scmp.eq.s32.totalorder %s31, 0
      %p289 = por %p287, %p288
      %p290 = scmp.ne.s32.totalorder %s279, %s282
      %p291 = scmp.eq.s32.totalorder %s36, 35
      %p292 = por %p290, %p291
      %p293 = scmp.ne.s32.totalorder %s282, %s283
      %p294 = scmp.eq.s32.totalorder %s36, 0
      %p295 = por %p293, %p294
      %p296 = scmp.ne.s32.totalorder %s282, %s283
      %p297 = scmp.eq.s32.totalorder %s37, 35
      %p298 = por %p296, %p297
      %p300 = scmp.ne.s32.totalorder %s283, %s299
      %p301 = scmp.eq.s32.totalorder %s37, 0
      %p302 = por %p300, %p301
      %s304 = sadd.s32 %s303, 1
      %p307 = scmp.eq.s32.totalorder %s31, 35
      %p308 = scmp.ne.s32.totalorder %s303, %s305
      %p309 = scmp.eq.s32.totalorder %s31, 0
      %p310 = por %p308, %p309
      %p311 = scmp.ne.s32.totalorder %s303, %s305
      %p312 = scmp.eq.s32.totalorder %s36, 35
      %p313 = por %p311, %p312
      %p314 = scmp.ne.s32.totalorder %s305, %s306
      %p315 = scmp.eq.s32.totalorder %s36, 0
      %p316 = por %p314, %p315
      %p317 = scmp.ne.s32.totalorder %s305, %s306
      %p318 = scmp.eq.s32.totalorder %s37, 35
      %p319 = por %p317, %p318
      %p321 = scmp.ne.s32.totalorder %s306, %s320
      %p322 = scmp.eq.s32.totalorder %s37, 0
      %p323 = por %p321, %p322
      %s324 = ssub.s32 %s38, %s64
      %s325 = ssub.s32 %s39, %s60
      %s326 = sor.u32 %s324, %s325
      %p327 = scmp.eq.s32.totalorder %s326, 0
      %s329 = sadd.s32 %s328, 1
      %s330 = scalar_select %p327, %s328, %s329
      %p333 = pneg %p327
      %p334 = scmp.eq.s32.totalorder %s31, 35
      %p335 = por %p333, %p334
      %p336 = scmp.ne.s32.totalorder %s328, %s331
      %p337 = scmp.eq.s32.totalorder %s31, 0
      %p338 = por %p336, %p337
      %p339 = scmp.ne.s32.totalorder %s328, %s331
      %p340 = scmp.eq.s32.totalorder %s36, 35
      %p341 = por %p339, %p340
      %p342 = scmp.ne.s32.totalorder %s331, %s332
      %p343 = scmp.eq.s32.totalorder %s36, 0
      %p344 = por %p342, %p343
      %p345 = scmp.ne.s32.totalorder %s331, %s332
      %p346 = scmp.eq.s32.totalorder %s37, 35
      %p347 = por %p345, %p346
      %p349 = scmp.ne.s32.totalorder %s332, %s348
      %p350 = scmp.eq.s32.totalorder %s37, 0
      %p351 = por %p349, %p350
      %p352 = scmp.le.s32.totalorder 1, %s31
      %p353 = scmp.lt.s32.totalorder %s31, 37
      %p354 = pnand %p352, %p353
      %p355 = pneg %p354
      // Predicated region
      $region9: #{tpu_custom_call.1} parent=5 // pred_check
        _
      $region10: #{tpu_custom_call.1} parent=5 // pred_check_branch
        %357 = sbr.rel (%p354) target = $region12
      $region11: #{tpu_custom_call.1} parent=5 // pred_region
        %s358 = ssub.s32 %s31, 1
        // Predicated region
        $region13: #{tpu_custom_call.1} parent=11 // pred_check
          %p359 = pneg %p316
        $region14: #{tpu_custom_call.1} parent=11 // pred_check_branch
          %361 = sbr.rel (%p359) target = $region16
        $region15: #{tpu_custom_call.1} parent=11 // pred_region
          _
        $region16: #{tpu_custom_call.1} parent=11 // pred_fallthru
          _
      $region12: #{tpu_custom_call.1} parent=5 // pred_fallthru
        _
      %p362 = scmp.lt.s32.totalorder %s31, 36
      // Predicated region
      $region17: #{tpu_custom_call.1} parent=5 // pred_check
        %p363 = pneg %p362
      $region18: #{tpu_custom_call.1} parent=5 // pred_check_branch
        %365 = sbr.rel (%p363) target = $region20
      $region19: #{tpu_custom_call.1} parent=5 // pred_region
        // Predicated region
        $region21: #{tpu_custom_call.1} parent=19 // pred_check
          %p366 = pneg %p79
        $region22: #{tpu_custom_call.1} parent=19 // pred_check_branch
          %368 = sbr.rel (%p366) target = $region24
        $region23: #{tpu_custom_call.1} parent=19 // pred_region
          %s369 = sand.u32 %s69, 1
          %s370 = scalar_lea.sflag [#allocation8], %s369
          %s371 = sand.u32 %s69, 1
          %s372 = smul.addr %s371, 8
          %s373 = scalar_lea.vmem [#allocation7], %s372
          %s375 = ssub.s32 128, 128
          %376 = vsyncadd %s370, %s375
          %s377 = smul.addr %s38, 3
          %s378 = sadd.s32 %s39, %s377
          %s379 = smul.addr %s378, 128
          %s380 = scalar_lea.hbm %s0, %s379
          %s382 = sshll.u32 %s373, 4
          %s383 = int_to_ptr.vmem [resolvable:$true] %s382
          %385 = dma.hbm_to_vmem [thread:$0]  %s380, 128, %s383, %s370
        $region24: #{tpu_custom_call.1} parent=19 // pred_fallthru
          _
        // Predicated region
        $region25: #{tpu_custom_call.1} parent=19 // pred_check
          %p386 = pneg %p107
        $region26: #{tpu_custom_call.1} parent=19 // pred_check_branch
          %388 = sbr.rel (%p386) target = $region28
        $region27: #{tpu_custom_call.1} parent=19 // pred_region
          %s389 = sand.u32 %s31, 1
          %s390 = scalar_lea.sflag [#allocation11], %s389
          %s391 = sand.u32 %s97, 1
          %s392 = smul.addr %s391, 8
          %s393 = scalar_lea.vmem [#allocation10], %s392
          %s395 = ssub.s32 128, 128
          %396 = vsyncadd %s390, %s395
          %s397 = smul.addr %s38, 3
          %s398 = sadd.s32 %s41, %s397
          %s399 = smul.addr %s398, 128
          %s400 = scalar_lea.hbm %s1, %s399
          %s402 = sshll.u32 %s393, 4
          %s403 = int_to_ptr.vmem [resolvable:$true] %s402
          %405 = dma.hbm_to_vmem [thread:$0]  %s400, 128, %s403, %s390
        $region28: #{tpu_custom_call.1} parent=19 // pred_fallthru
          _
        // Predicated region
        $region29: #{tpu_custom_call.1} parent=19 // pred_check
          %p406 = pneg %p133
        $region30: #{tpu_custom_call.1} parent=19 // pred_check_branch
          %408 = sbr.rel (%p406) target = $region32
        $region31: #{tpu_custom_call.1} parent=19 // pred_region
          %s409 = sand.u32 %s31, 1
          %s410 = scalar_lea.sflag [#allocation11], %s409
          %s411 = sand.u32 %s123, 1
          %s412 = smul.addr %s411, 16
          %s413 = scalar_lea.vmem [#allocation12], %s412
          %s415 = ssub.s32 256, 256
          %416 = vsyncadd %s410, %s415
          %s417 = smul.addr %s40, 4
          %s418 = smul.addr %s417, 64
          %s419 = scalar_lea.hbm %s2, %s418
          %s420 = sshll.u32 %s413, 4
          %s421 = int_to_ptr.vmem [resolvable:$true] %s420
          %426 = dma.hbm_to_vmem [thread:$0]  %s419, 256, %s421, %s410, 64, 64, 4
        $region32: #{tpu_custom_call.1} parent=19 // pred_fallthru
          _
        // Predicated region
        $region33: #{tpu_custom_call.1} parent=19 // pred_check
          %p427 = pneg %p159
        $region34: #{tpu_custom_call.1} parent=19 // pred_check_branch
          %429 = sbr.rel (%p427) target = $region36
        $region35: #{tpu_custom_call.1} parent=19 // pred_region
          %p430 = scmp.lt.s32.totalorder %s40, 1
          %s431 = scalar_select %p430, %s40, 1
          %s432 = scalar_lea.vmem %s3, %s431
        $region36: #{tpu_custom_call.1} parent=19 // pred_fallthru
          _
        // Predicated region
        $region37: #{tpu_custom_call.1} parent=19 // pred_check
          %p433 = pneg %p185
        $region38: #{tpu_custom_call.1} parent=19 // pred_check_branch
          %435 = sbr.rel (%p433) target = $region40
        $region39: #{tpu_custom_call.1} parent=19 // pred_region
          %s436 = sand.u32 %s31, 1
          %s437 = scalar_lea.sflag [#allocation14], %s436
          %s438 = sand.u32 %s175, 1
          %s439 = smul.addr %s438, 16
          %s440 = scalar_lea.vmem [#allocation13], %s439
          %s442 = ssub.s32 256, 256
          %443 = vsyncadd %s437, %s442
          %s444 = smul.addr %s40, 4
          %s445 = smul.addr %s444, 64
          %s446 = scalar_lea.hbm %s4, %s445
          %s447 = sshll.u32 %s440, 4
          %s448 = int_to_ptr.vmem [resolvable:$true] %s447
          %453 = dma.hbm_to_vmem [thread:$0]  %s446, 256, %s448, %s437, 64, 64, 4
        $region40: #{tpu_custom_call.1} parent=19 // pred_fallthru
          _
        // Predicated region
        $region41: #{tpu_custom_call.1} parent=19 // pred_check
          %p454 = pneg %p211
        $region42: #{tpu_custom_call.1} parent=19 // pred_check_branch
          %456 = sbr.rel (%p454) target = $region44
        $region43: #{tpu_custom_call.1} parent=19 // pred_region
          %p457 = scmp.lt.s32.totalorder %s40, 1
          %s458 = scalar_select %p457, %s40, 1
          %s459 = scalar_lea.vmem %s5, %s458
        $region44: #{tpu_custom_call.1} parent=19 // pred_fallthru
          _
        // Predicated region
        $region45: #{tpu_custom_call.1} parent=19 // pred_check
          %p460 = pneg %p237
        $region46: #{tpu_custom_call.1} parent=19 // pred_check_branch
          %462 = sbr.rel (%p460) target = $region48
        $region47: #{tpu_custom_call.1} parent=19 // pred_region
          %s463 = sand.u32 %s31, 1
          %s464 = scalar_lea.sflag [#allocation14], %s463
          %s465 = sand.u32 %s227, 1
          %s466 = smul.addr %s465, 16
          %s467 = scalar_lea.vmem [#allocation15], %s466
          %s469 = ssub.s32 256, 256
          %470 = vsyncadd %s464, %s469
          %s471 = smul.addr %s40, 4
          %s472 = smul.addr %s471, 64
          %s473 = scalar_lea.hbm %s6, %s472
          %s474 = sshll.u32 %s467, 4
          %s475 = int_to_ptr.vmem [resolvable:$true] %s474
          %480 = dma.hbm_to_vmem [thread:$0]  %s473, 256, %s475, %s464, 64, 64, 4
        $region48: #{tpu_custom_call.1} parent=19 // pred_fallthru
          _
        // Predicated region
        $region49: #{tpu_custom_call.1} parent=19 // pred_check
          %p481 = pneg %p263
        $region50: #{tpu_custom_call.1} parent=19 // pred_check_branch
          %483 = sbr.rel (%p481) target = $region52
        $region51: #{tpu_custom_call.1} parent=19 // pred_region
          %p484 = scmp.lt.s32.totalorder %s40, 1
          %s485 = scalar_select %p484, %s40, 1
          %s486 = scalar_lea.vmem %s7, %s485
        $region52: #{tpu_custom_call.1} parent=19 // pred_fallthru
          _
        // Predicated region
        $region53: #{tpu_custom_call.1} parent=19 // pred_check
          %p487 = pneg %p289
        $region54: #{tpu_custom_call.1} parent=19 // pred_check_branch
          %489 = sbr.rel (%p487) target = $region56
        $region55: #{tpu_custom_call.1} parent=19 // pred_region
          %s490 = sand.u32 %s279, 1
          %s491 = scalar_lea.sflag [#allocation17], %s490
          %s492 = sand.u32 %s279, 1
          %s493 = smul.addr %s492, 16
          %s494 = scalar_lea.vmem [#allocation16], %s493
          %s496 = ssub.s32 256, 256
          %497 = vsyncadd %s491, %s496
          %s498 = smul.addr %s40, 4
          %s499 = smul.addr %s498, 64
          %s500 = scalar_lea.hbm %s8, %s499
          %s501 = sshll.u32 %s494, 4
          %s502 = int_to_ptr.vmem [resolvable:$true] %s501
          %507 = dma.hbm_to_vmem [thread:$0]  %s500, 256, %s502, %s491, 64, 64, 4
        $region56: #{tpu_custom_call.1} parent=19 // pred_fallthru
          _
      $region20: #{tpu_custom_call.1} parent=5 // pred_fallthru
        _
      %p508 = scmp.le.s32.totalorder 1, %s31
      %p509 = scmp.lt.s32.totalorder %s31, 37
      %p510 = pnand %p508, %p509
      %p511 = pneg %p510
      // Predicated region
      $region57: #{tpu_custom_call.1} parent=5 // pred_check
        _
      $region58: #{tpu_custom_call.1} parent=5 // pred_check_branch
        %513 = sbr.rel (%p510) target = $region60
      $region59: #{tpu_custom_call.1} parent=5 // pred_region
        %s514 = ssub.s32 %s31, 1
        %s515 = sand.u32 %s72, 1
        %s516 = scalar_lea.sflag [#allocation8], %s515
        %s517 = sand.u32 %s72, 1
        %s518 = smul.addr %s517, 8
        %s519 = scalar_lea.vmem [#allocation7], %s518
        // Predicated region
        $region61: #{tpu_custom_call.1} parent=59 // pred_check
          %p520 = pneg %p85
        $region62: #{tpu_custom_call.1} parent=59 // pred_check_branch
          %522 = sbr.rel (%p520) target = $region64
        $region63: #{tpu_custom_call.1} parent=59 // pred_region
          %523 = dma.done %s516, 128
        $region64: #{tpu_custom_call.1} parent=59 // pred_fallthru
          _
        %s524 = sand.u32 %s36, 1
        %s525 = scalar_lea.sflag [#allocation11], %s524
        %s526 = sand.u32 %s100, 1
        %s527 = smul.addr %s526, 8
        %s528 = scalar_lea.vmem [#allocation10], %s527
        // Predicated region
        $region65: #{tpu_custom_call.1} parent=59 // pred_check
          %p529 = pneg %p113
        $region66: #{tpu_custom_call.1} parent=59 // pred_check_branch
          %531 = sbr.rel (%p529) target = $region68
        $region67: #{tpu_custom_call.1} parent=59 // pred_region
          %532 = dma.done %s525, 128
        $region68: #{tpu_custom_call.1} parent=59 // pred_fallthru
          _
        %s533 = sand.u32 %s36, 1
        %s534 = scalar_lea.sflag [#allocation11], %s533
        %s535 = sand.u32 %s126, 1
        %s536 = smul.addr %s535, 16
        %s537 = scalar_lea.vmem [#allocation12], %s536
        // Predicated region
        $region69: #{tpu_custom_call.1} parent=59 // pred_check
          %p538 = pneg %p139
        $region70: #{tpu_custom_call.1} parent=59 // pred_check_branch
          %540 = sbr.rel (%p538) target = $region72
        $region71: #{tpu_custom_call.1} parent=59 // pred_region
          %541 = dma.done %s534, 256
        $region72: #{tpu_custom_call.1} parent=59 // pred_fallthru
          _
        %s542 = sand.u32 %s36, 1
        %s543 = scalar_lea.sflag [#allocation14], %s542
        %s544 = sand.u32 %s178, 1
        %s545 = smul.addr %s544, 16
        %s546 = scalar_lea.vmem [#allocation13], %s545
        // Predicated region
        $region73: #{tpu_custom_call.1} parent=59 // pred_check
          %p547 = pneg %p191
        $region74: #{tpu_custom_call.1} parent=59 // pred_check_branch
          %549 = sbr.rel (%p547) target = $region76
        $region75: #{tpu_custom_call.1} parent=59 // pred_region
          %550 = dma.done %s543, 256
        $region76: #{tpu_custom_call.1} parent=59 // pred_fallthru
          _
        %s551 = sand.u32 %s36, 1
        %s552 = scalar_lea.sflag [#allocation14], %s551
        %s553 = sand.u32 %s230, 1
        %s554 = smul.addr %s553, 16
        %s555 = scalar_lea.vmem [#allocation15], %s554
        // Predicated region
        $region77: #{tpu_custom_call.1} parent=59 // pred_check
          %p556 = pneg %p243
        $region78: #{tpu_custom_call.1} parent=59 // pred_check_branch
          %558 = sbr.rel (%p556) target = $region80
        $region79: #{tpu_custom_call.1} parent=59 // pred_region
          %559 = dma.done %s552, 256
        $region80: #{tpu_custom_call.1} parent=59 // pred_fallthru
          _
        %s560 = sand.u32 %s282, 1
        %s561 = scalar_lea.sflag [#allocation17], %s560
        %s562 = sand.u32 %s282, 1
        %s563 = smul.addr %s562, 16
        %s564 = scalar_lea.vmem [#allocation16], %s563
        // Predicated region
        $region81: #{tpu_custom_call.1} parent=59 // pred_check
          %p565 = pneg %p295
        $region82: #{tpu_custom_call.1} parent=59 // pred_check_branch
          %567 = sbr.rel (%p565) target = $region84
        $region83: #{tpu_custom_call.1} parent=59 // pred_region
          %568 = dma.done %s561, 256
        $region84: #{tpu_custom_call.1} parent=59 // pred_fallthru
          _
        %s569 = sand.u32 %s72, 1
        %s570 = scalar_lea.sflag [#allocation8], %s569
        %s571 = sand.u32 %s72, 1
        %s572 = smul.addr %s571, 8
        %s573 = scalar_lea.vmem [#allocation7], %s572
        %p574 = pneg %p85
        %p575 = pneg %p82
        %s576 = sand.u32 %s36, 1
        %s577 = scalar_lea.sflag [#allocation11], %s576
        %s578 = sand.u32 %s100, 1
        %s579 = smul.addr %s578, 8
        %s580 = scalar_lea.vmem [#allocation10], %s579
        %p581 = pneg %p113
        %p582 = pneg %p110
        %s583 = sand.u32 %s36, 1
        %s584 = scalar_lea.sflag [#allocation11], %s583
        %s585 = sand.u32 %s126, 1
        %s586 = smul.addr %s585, 16
        %s587 = scalar_lea.vmem [#allocation12], %s586
        %p588 = pneg %p139
        %p589 = pneg %p136
        %p590 = scmp.lt.s32.totalorder %s44, 1
        %s591 = scalar_select %p590, %s44, 1
        %s592 = scalar_lea.vmem %s3, %s591
        %p593 = pneg %p165
        %p594 = pneg %p162
        %s595 = sand.u32 %s36, 1
        %s596 = scalar_lea.sflag [#allocation14], %s595
        %s597 = sand.u32 %s178, 1
        %s598 = smul.addr %s597, 16
        %s599 = scalar_lea.vmem [#allocation13], %s598
        %p600 = pneg %p191
        %p601 = pneg %p188
        %p602 = scmp.lt.s32.totalorder %s44, 1
        %s603 = scalar_select %p602, %s44, 1
        %s604 = scalar_lea.vmem %s5, %s603
        %p605 = pneg %p217
        %p606 = pneg %p214
        %s607 = sand.u32 %s36, 1
        %s608 = scalar_lea.sflag [#allocation14], %s607
        %s609 = sand.u32 %s230, 1
        %s610 = smul.addr %s609, 16
        %s611 = scalar_lea.vmem [#allocation15], %s610
        %p612 = pneg %p243
        %p613 = pneg %p240
        %p614 = scmp.lt.s32.totalorder %s44, 1
        %s615 = scalar_select %p614, %s44, 1
        %s616 = scalar_lea.vmem %s7, %s615
        %p617 = pneg %p269
        %p618 = pneg %p266
        %s619 = sand.u32 %s282, 1
        %s620 = scalar_lea.sflag [#allocation17], %s619
        %s621 = sand.u32 %s282, 1
        %s622 = smul.addr %s621, 16
        %s623 = scalar_lea.vmem [#allocation16], %s622
        %p624 = pneg %p295
        %p625 = pneg %p292
        %p626 = pneg %p316
        %p627 = pneg %p313
        %p628 = pneg %p344
        %p629 = pneg %p341
        %s630 = sand.u32 %s331, 1
        %s631 = scalar_lea.sflag [#allocation9], %s630
        %s632 = sand.u32 %s331, 1
        %s633 = smul.addr %s632, 8
        %s634 = scalar_lea.vmem [#allocation18], %s633
        %p635 = scmp.lt.s32.totalorder %s44, 1
        %s636 = scalar_select %p635, %s44, 1
        %s637 = scalar_lea.vmem %s3, %s636
        %p638 = scmp.lt.s32.totalorder %s44, 1
        %s639 = scalar_select %p638, %s44, 1
        %s640 = scalar_lea.vmem %s5, %s639
        %p641 = scmp.lt.s32.totalorder %s44, 1
        %s642 = scalar_select %p641, %s44, 1
        %s643 = scalar_lea.vmem %s7, %s642
        %p645 = scmp.eq.s32.totalorder %s44, 0
        %p646 = scmp.eq.s32.totalorder %s45, 0
        %p647 = pnand %p645, %p646
        %p648 = pneg %p647
        // Predicated region
        $region85: #{tpu_custom_call.1} parent=59 // pred_check
          _
        $region86: #{tpu_custom_call.1} parent=59 // pred_check_branch
          %650 = sbr.rel (%p647) target = $region88
        $region87: #{tpu_custom_call.1} parent=59 // pred_region
          %vm651 = vcmask 261120
          %652 = vst.msk [vmem:[#allocation6] sm:$0xff] %vm651, 0.0
        $region88: #{tpu_custom_call.1} parent=59 // pred_fallthru
          _
        // Predicated region
        $region89: #{tpu_custom_call.1} parent=59 // pred_check
          %p653 = pneg %p646
        $region90: #{tpu_custom_call.1} parent=59 // pred_check_branch
          %655 = sbr.rel (%p653) target = $region92
        $region91: #{tpu_custom_call.1} parent=59 // pred_region
          %v656 = vld [vmem:[%s519] sm:$0xff]
          %v657 = vpack.c.bf16 %v656, %v656
          %v658 = vld [vmem:[%s537] sm:$0xf]
          %v659 = vld [vmem:[%s537 + $0x4] sm:$0xf]
          %v660 = vld [vmem:[%s537 + $0x8] sm:$0xf]
          %v661 = vld [vmem:[%s537 + $0xc] sm:$0xf]
          %v662 = vld [vmem:[%s637] sm:$0x1]
          %v664 = vlaneseq
          %v665 = vshrl.u32 %v664, 7
          %v666 = vsub.s32 0, %v665
          %v667 = vrot.slane %v662, %v666
          %v673 = vunpack.c.l.b16 %v658
          %v674 = vunpack.c.l.b16 %v659
          %v675 = vunpack.c.l.b16 %v660
          %v676 = vunpack.c.l.b16 %v661
          %v677 = vpack.c.b16 %v674, %v673
          %v678 = vpack.c.b16 %v676, %v675
          %vm681 = vcmask 261120
          %v683 = vsel %vm681, %v657, 0
          %685 = vmatprep.subr.bf16.mxu0 0
          %686 = vmatpush1.bf16.msra.mxu0 %v677
          %687 = vmatprep.subr.bf16.mxu0 0
          %688 = vmatpush1.bf16.msra.mxu0 %v678
          %689 = vmatprep.subr.bf16.mxu0 0
          %690 = vmatpush1.bf16.msra.mxu0 0
          %691 = vmatprep.subr.bf16.mxu0 0
          %692 = vmatpush1.bf16.msra.mxu0 0
          %693 = vmatprep.subr.bf16.mxu0 0
          %694 = vmatpush1.bf16.msra.mxu0 0
          %695 = vmatprep.subr.bf16.mxu0 0
          %696 = vmatpush1.bf16.msra.mxu0 0
          %697 = vmatprep.subr.bf16.mxu0 0
          %698 = vmatpush1.bf16.msra.mxu0 0
          %699 = vmatprep.subr.bf16.mxu0 0
          %700 = vmatpush1.bf16.msra.mxu0 0
          %701 = vmatprep.subr.bf16.mxu0 0
          %702 = vmatpush1.bf16.msra.mxu0 0
          %703 = vmatprep.subr.bf16.mxu0 0
          %704 = vmatpush1.bf16.msra.mxu0 0
          %705 = vmatprep.subr.bf16.mxu0 0
          %706 = vmatpush1.bf16.msra.mxu0 0
          %707 = vmatprep.subr.bf16.mxu0 0
          %708 = vmatpush1.bf16.msra.mxu0 0
          %709 = vmatprep.subr.bf16.mxu0 0
          %710 = vmatpush1.bf16.msra.mxu0 0
          %711 = vmatprep.subr.bf16.mxu0 0
          %712 = vmatpush1.bf16.msra.mxu0 0
          %713 = vmatprep.subr.bf16.mxu0 0
          %714 = vmatpush1.bf16.msra.mxu0 0
          %715 = vmatprep.subr.bf16.mxu0 0
          %716 = vmatpush1.bf16.msra.mxu0 0
          %717 = vmatprep.mubr.bf16.mxu0 0
          %718 = vmatmul.mubr.bf16.gmra.mrb[0].mxu0 %v683
          %v719 = vpop.f32.mrb[0].mxu0
          %v720 = vadd.f32 %v667, %v719
          %v721 = vpop.f32.mrb[0].mxu0
          %v722 = vpop.f32.mrb[0].mxu0
          %v723 = vpop.f32.mrb[0].mxu0
          %724 = vdwg.mxu0
          %v725 = vpack.c.bf16 %v720, %v720
          %vm726 = vcmask 257024
          %727 = vst.msk [vmem:[#allocation2] sm:$0xf] %vm726, %v725
          %vm728 = vcmask 7168
          %729 = vst.msk [vmem:[#allocation3] sm:$0xff] %vm728, -1e+30
          %730 = vst.msk [vmem:[#allocation4] sm:$0xff] %vm728, 0.0
          %731 = vst.msk [vmem:[#allocation5] sm:$0xff] %vm681, 0.0
        $region92: #{tpu_custom_call.1} parent=59 // pred_fallthru
          _
        %v732 = vld [vmem:[%s528] sm:$0xff]
        %v733 = vpack.c.bf16 %v732, %v732
        %v734 = vld [vmem:[%s546] sm:$0xf]
        %v735 = vld [vmem:[%s546 + $0x4] sm:$0xf]
        %v736 = vld [vmem:[%s546 + $0x8] sm:$0xf]
        %v737 = vld [vmem:[%s546 + $0xc] sm:$0xf]
        %v738 = vld [vmem:[%s640] sm:$0x1]
        %v740 = vlaneseq
        %v741 = vshrl.u32 %v740, 7
        %v742 = vsub.s32 0, %v741
        %v743 = vrot.slane %v738, %v742
        %v749 = vunpack.c.l.b16 %v734
        %v750 = vunpack.c.l.b16 %v735
        %v751 = vunpack.c.l.b16 %v736
        %v752 = vunpack.c.l.b16 %v737
        %v753 = vpack.c.b16 %v750, %v749
        %v754 = vpack.c.b16 %v752, %v751
        %vm757 = vcmask 261120
        %v759 = vsel %vm757, %v733, 0
        %761 = vmatprep.subr.bf16.mxu0 0
        %762 = vmatpush1.bf16.msra.mxu0 %v753
        %763 = vmatprep.subr.bf16.mxu0 0
        %764 = vmatpush1.bf16.msra.mxu0 %v754
        %765 = vmatprep.subr.bf16.mxu0 0
        %766 = vmatpush1.bf16.msra.mxu0 0
        %767 = vmatprep.subr.bf16.mxu0 0
        %768 = vmatpush1.bf16.msra.mxu0 0
        %769 = vmatprep.subr.bf16.mxu0 0
        %770 = vmatpush1.bf16.msra.mxu0 0
        %771 = vmatprep.subr.bf16.mxu0 0
        %772 = vmatpush1.bf16.msra.mxu0 0
        %773 = vmatprep.subr.bf16.mxu0 0
        %774 = vmatpush1.bf16.msra.mxu0 0
        %775 = vmatprep.subr.bf16.mxu0 0
        %776 = vmatpush1.bf16.msra.mxu0 0
        %777 = vmatprep.subr.bf16.mxu0 0
        %778 = vmatpush1.bf16.msra.mxu0 0
        %779 = vmatprep.subr.bf16.mxu0 0
        %780 = vmatpush1.bf16.msra.mxu0 0
        %781 = vmatprep.subr.bf16.mxu0 0
        %782 = vmatpush1.bf16.msra.mxu0 0
        %783 = vmatprep.subr.bf16.mxu0 0
        %784 = vmatpush1.bf16.msra.mxu0 0
        %785 = vmatprep.subr.bf16.mxu0 0
        %786 = vmatpush1.bf16.msra.mxu0 0
        %787 = vmatprep.subr.bf16.mxu0 0
        %788 = vmatpush1.bf16.msra.mxu0 0
        %789 = vmatprep.subr.bf16.mxu0 0
        %790 = vmatpush1.bf16.msra.mxu0 0
        %791 = vmatprep.subr.bf16.mxu0 0
        %792 = vmatpush1.bf16.msra.mxu0 0
        %793 = vmatprep.mubr.bf16.mxu0 0
        %794 = vmatmul.mubr.bf16.gmra.mrb[0].mxu0 %v759
        %v795 = vpop.f32.mrb[0].mxu0
        %v796 = vadd.f32 %v743, %v795
        %v797 = vpop.f32.mrb[0].mxu0
        %v798 = vpop.f32.mrb[0].mxu0
        %v799 = vpop.f32.mrb[0].mxu0
        %800 = vdwg.mxu0
        %v801 = vpack.c.bf16 %v796, %v796
        %v802 = vld [vmem:[%s555] sm:$0xf]
        %v803 = vld [vmem:[%s555 + $0x4] sm:$0xf]
        %v804 = vld [vmem:[%s555 + $0x8] sm:$0xf]
        %v805 = vld [vmem:[%s555 + $0xc] sm:$0xf]
        %v806 = vld [vmem:[%s643] sm:$0x1]
        %v808 = vlaneseq
        %v809 = vshrl.u32 %v808, 7
        %v810 = vsub.s32 0, %v809
        %v811 = vrot.slane %v806, %v810
        %v817 = vunpack.c.l.b16 %v802
        %v818 = vunpack.c.l.b16 %v803
        %v819 = vunpack.c.l.b16 %v804
        %v820 = vunpack.c.l.b16 %v805
        %v821 = vpack.c.b16 %v818, %v817
        %v822 = vpack.c.b16 %v820, %v819
        %825 = vmatprep.subr.bf16.mxu0 0
        %826 = vmatpush1.bf16.msra.mxu0 %v821
        %827 = vmatprep.subr.bf16.mxu0 0
        %828 = vmatpush1.bf16.msra.mxu0 %v822
        %829 = vmatprep.subr.bf16.mxu0 0
        %830 = vmatpush1.bf16.msra.mxu0 0
        %831 = vmatprep.subr.bf16.mxu0 0
        %832 = vmatpush1.bf16.msra.mxu0 0
        %833 = vmatprep.subr.bf16.mxu0 0
        %834 = vmatpush1.bf16.msra.mxu0 0
        %835 = vmatprep.subr.bf16.mxu0 0
        %836 = vmatpush1.bf16.msra.mxu0 0
        %837 = vmatprep.subr.bf16.mxu0 0
        %838 = vmatpush1.bf16.msra.mxu0 0
        %839 = vmatprep.subr.bf16.mxu0 0
        %840 = vmatpush1.bf16.msra.mxu0 0
        %841 = vmatprep.subr.bf16.mxu0 0
        %842 = vmatpush1.bf16.msra.mxu0 0
        %843 = vmatprep.subr.bf16.mxu0 0
        %844 = vmatpush1.bf16.msra.mxu0 0
        %845 = vmatprep.subr.bf16.mxu0 0
        %846 = vmatpush1.bf16.msra.mxu0 0
        %847 = vmatprep.subr.bf16.mxu0 0
        %848 = vmatpush1.bf16.msra.mxu0 0
        %849 = vmatprep.subr.bf16.mxu0 0
        %850 = vmatpush1.bf16.msra.mxu0 0
        %851 = vmatprep.subr.bf16.mxu0 0
        %852 = vmatpush1.bf16.msra.mxu0 0
        %853 = vmatprep.subr.bf16.mxu0 0
        %854 = vmatpush1.bf16.msra.mxu0 0
        %855 = vmatprep.subr.bf16.mxu0 0
        %856 = vmatpush1.bf16.msra.mxu0 0
        %857 = vmatprep.mubr.bf16.mxu0 0
        %858 = vmatmul.mubr.bf16.gmra.mrb[0].mxu0 %v759
        %v859 = vpop.f32.mrb[0].mxu0
        %v860 = vadd.f32 %v811, %v859
        %v861 = vpop.f32.mrb[0].mxu0
        %v862 = vpop.f32.mrb[0].mxu0
        %v863 = vpop.f32.mrb[0].mxu0
        %864 = vdwg.mxu0
        %v865 = vpack.c.bf16 %v860, %v860
        %v866 = vld [vmem:[#allocation2] sm:$0xf]
        %v868 = vsel %vm757, %v866, 0
        %v871 = vsel %vm757, %v801, 0
        %873 = vmatprep.subr.bf16.mxu0 0
        %874 = vmatpush1.bf16.xpose.msra.mxu0 %v871
        %875 = vmatprep.subr.bf16.mxu0 0
        %876 = vmatpush1.bf16.xpose.msra.mxu0 0
        %877 = vmatprep.subr.bf16.mxu0 0
        %878 = vmatpush1.bf16.xpose.msra.mxu0 0
        %879 = vmatprep.subr.bf16.mxu0 0
        %880 = vmatpush1.bf16.xpose.msra.mxu0 0
        %881 = vmatprep.subr.bf16.mxu0 0
        %882 = vmatpush1.bf16.xpose.msra.mxu0 0
        %883 = vmatprep.subr.bf16.mxu0 0
        %884 = vmatpush1.bf16.xpose.msra.mxu0 0
        %885 = vmatprep.subr.bf16.mxu0 0
        %886 = vmatpush1.bf16.xpose.msra.mxu0 0
        %887 = vmatprep.subr.bf16.mxu0 0
        %888 = vmatpush1.bf16.xpose.msra.mxu0 0
        %889 = vmatprep.subr.bf16.mxu0 0
        %890 = vmatpush1.bf16.xpose.msra.mxu0 0
        %891 = vmatprep.subr.bf16.mxu0 0
        %892 = vmatpush1.bf16.xpose.msra.mxu0 0
        %893 = vmatprep.subr.bf16.mxu0 0
        %894 = vmatpush1.bf16.xpose.msra.mxu0 0
        %895 = vmatprep.subr.bf16.mxu0 0
        %896 = vmatpush1.bf16.xpose.msra.mxu0 0
        %897 = vmatprep.subr.bf16.mxu0 0
        %898 = vmatpush1.bf16.xpose.msra.mxu0 0
        %899 = vmatprep.subr.bf16.mxu0 0
        %900 = vmatpush1.bf16.xpose.msra.mxu0 0
        %901 = vmatprep.subr.bf16.mxu0 0
        %902 = vmatpush1.bf16.xpose.msra.mxu0 0
        %903 = vmatprep.subr.bf16.mxu0 0
        %904 = vmatpush1.bf16.xpose.msra.mxu0 0
        %905 = vmatprep.mubr.bf16.mxu0 0
        %906 = vmatmul.mubr.bf16.gmra.mrb[0].mxu0 %v868
        %v907 = vpop.f32.mrb[0].mxu0
        %v908 = vadd.f32 0.0, %v907
        %v909 = vpop.f32.mrb[0].mxu0
        %v910 = vpop.f32.mrb[0].mxu0
        %v911 = vpop.f32.mrb[0].mxu0
        %912 = vdwg.mxu0
        %v913 = vmul.f32 %v908, 0.17677669
        %s914 = smul.u32 %s45, 8
        %v915 = vlaneseq
        %v916 = vand.u32 %v915, 127
        %v917 = vstv %s914
        %v918 = vadd.s32 %v917, %v916
        %vm919 = vcmp.lt.s32.totalorder %v918, 20
        %v920 = vsel %vm919, 1, 0
        %vm921 = vcmp.eq.s32.totalorder %v920, 1
        %v922 = vsel %vm921, %v913, -1e+30
        %v923 = vld [vmem:[#allocation3] sm:$0xff]
        %vm924 = vcmask 64512
        %v925 = vsel %vm924, %v922, -inf
        %926 = vmax.xlane.f32.xlu0 %v925
        %v927 = vpop.xlane.xlu0 %926
        %v928 = vmax.f32 %v923, %v927
        %v929 = vsub.f32 %v923, %v928
        %v930 = vmul.f32 %v929, 1.442695
        %v931 = vpow.pop %v930
        %933 = vset.pattern.permute.xlu0 0
        %934 = vperm.xlu0 %933, %v928
        %v935 = vpop.permute.xlu0 %934
        %v937 = vsub.f32 %v922, %v935
        %v938 = vmul.f32 %v937, 1.442695
        %v939 = vpow.pop %v938
        %v940 = vld [vmem:[#allocation4] sm:$0xff]
        %v941 = vmul.f32 %v931, %v940
        %v942 = vsel %vm924, %v939, 0.0
        %943 = vadd.xlane.f32.xlu0 %v942
        %v944 = vpop.xlane.xlu0 %943
        %v945 = vadd.f32 %v941, %v944
        %vm946 = vcmask 7168
        %947 = vst.msk [vmem:[#allocation4] sm:$0xff] %vm946, %v945
        %v948 = vld [vmem:[#allocation5] sm:$0xff]
        %950 = vset.pattern.permute.xlu0 0
        %951 = vperm.xlu0 %950, %v931
        %v952 = vpop.permute.xlu0 %951
        %v954 = vmul.f32 %v952, %v948
        %v955 = vpack.c.bf16 %v939, %v939
        %v957 = vsel %vm924, %v955, 0
        %vm959 = vcmask 1043456
        %v961 = vsel %vm959, %v865, 0
        %963 = vmatprep.subr.bf16.mxu0 0
        %964 = vmatpush1.bf16.msra.mxu0 %v961
        %965 = vmatprep.subr.bf16.mxu0 0
        %966 = vmatpush1.bf16.msra.mxu0 0
        %967 = vmatprep.subr.bf16.mxu0 0
        %968 = vmatpush1.bf16.msra.mxu0 0
        %969 = vmatprep.subr.bf16.mxu0 0
        %970 = vmatpush1.bf16.msra.mxu0 0
        %971 = vmatprep.subr.bf16.mxu0 0
        %972 = vmatpush1.bf16.msra.mxu0 0
        %973 = vmatprep.subr.bf16.mxu0 0
        %974 = vmatpush1.bf16.msra.mxu0 0
        %975 = vmatprep.subr.bf16.mxu0 0
        %976 = vmatpush1.bf16.msra.mxu0 0
        %977 = vmatprep.subr.bf16.mxu0 0
        %978 = vmatpush1.bf16.msra.mxu0 0
        %979 = vmatprep.subr.bf16.mxu0 0
        %980 = vmatpush1.bf16.msra.mxu0 0
        %981 = vmatprep.subr.bf16.mxu0 0
        %982 = vmatpush1.bf16.msra.mxu0 0
        %983 = vmatprep.subr.bf16.mxu0 0
        %984 = vmatpush1.bf16.msra.mxu0 0
        %985 = vmatprep.subr.bf16.mxu0 0
        %986 = vmatpush1.bf16.msra.mxu0 0
        %987 = vmatprep.subr.bf16.mxu0 0
        %988 = vmatpush1.bf16.msra.mxu0 0
        %989 = vmatprep.subr.bf16.mxu0 0
        %990 = vmatpush1.bf16.msra.mxu0 0
        %991 = vmatprep.subr.bf16.mxu0 0
        %992 = vmatpush1.bf16.msra.mxu0 0
        %993 = vmatprep.subr.bf16.mxu0 0
        %994 = vmatpush1.bf16.msra.mxu0 0
        %995 = vmatprep.mubr.bf16.mxu0 0
        %996 = vmatmul.mubr.bf16.gmra.mrb[0].mxu0 %v957
        %v997 = vpop.f32.mrb[0].mxu0
        %v998 = vadd.f32 0.0, %v997
        %v999 = vpop.f32.mrb[0].mxu0
        %v1000 = vpop.f32.mrb[0].mxu0
        %v1001 = vpop.f32.mrb[0].mxu0
        %1002 = vdwg.mxu0
        %v1003 = vadd.f32 %v954, %v998
        %1004 = vst.msk [vmem:[#allocation5] sm:$0xff] %vm757, %v1003
        %1005 = vst.msk [vmem:[#allocation3] sm:$0xff] %vm946, %v928
        %p1006 = scmp.eq.s32.totalorder %s45, 2
        // Predicated region
        $region93: #{tpu_custom_call.1} parent=59 // pred_check
          %p1007 = pneg %p1006
        $region94: #{tpu_custom_call.1} parent=59 // pred_check_branch
          %1009 = sbr.rel (%p1007) target = $region96
        $region95: #{tpu_custom_call.1} parent=59 // pred_region
          %v1010 = vld [vmem:[#allocation5] sm:$0xff]
          %v1011 = vld [vmem:[#allocation4] sm:$0xff]
          %v1012 = vrcp.pop %v1011
          %1014 = vset.pattern.permute.xlu0 0
          %1015 = vperm.xlu0 %1014, %v1012
          %v1016 = vpop.permute.xlu0 %1015
          %v1018 = vmul.f32 %v1010, %v1016
          %v1019 = vld [vmem:[#allocation6] sm:$0xff]
          %v1020 = vpack.c.bf16 %v1018, %v1018
          %v1021 = vld [vmem:[%s564] sm:$0xf]
          %v1022 = vld [vmem:[%s564 + $0x4] sm:$0xf]
          %v1023 = vld [vmem:[%s564 + $0x8] sm:$0xf]
          %v1024 = vld [vmem:[%s564 + $0xc] sm:$0xf]
          %v1029 = vunpack.c.l.b16 %v1021
          %v1030 = vunpack.c.l.b16 %v1022
          %v1031 = vunpack.c.l.b16 %v1023
          %v1032 = vunpack.c.l.b16 %v1024
          %v1033 = vpack.c.b16 %v1030, %v1029
          %v1034 = vpack.c.b16 %v1032, %v1031
          %v1038 = vsel %vm757, %v1020, 0
          %1040 = vmatprep.subr.bf16.mxu0 0
          %1041 = vmatpush1.bf16.msra.mxu0 %v1033
          %1042 = vmatprep.subr.bf16.mxu0 0
          %1043 = vmatpush1.bf16.msra.mxu0 %v1034
          %1044 = vmatprep.subr.bf16.mxu0 0
          %1045 = vmatpush1.bf16.msra.mxu0 0
          %1046 = vmatprep.subr.bf16.mxu0 0
          %1047 = vmatpush1.bf16.msra.mxu0 0
          %1048 = vmatprep.subr.bf16.mxu0 0
          %1049 = vmatpush1.bf16.msra.mxu0 0
          %1050 = vmatprep.subr.bf16.mxu0 0
          %1051 = vmatpush1.bf16.msra.mxu0 0
          %1052 = vmatprep.subr.bf16.mxu0 0
          %1053 = vmatpush1.bf16.msra.mxu0 0
          %1054 = vmatprep.subr.bf16.mxu0 0
          %1055 = vmatpush1.bf16.msra.mxu0 0
          %1056 = vmatprep.subr.bf16.mxu0 0
          %1057 = vmatpush1.bf16.msra.mxu0 0
          %1058 = vmatprep.subr.bf16.mxu0 0
          %1059 = vmatpush1.bf16.msra.mxu0 0
          %1060 = vmatprep.subr.bf16.mxu0 0
          %1061 = vmatpush1.bf16.msra.mxu0 0
          %1062 = vmatprep.subr.bf16.mxu0 0
          %1063 = vmatpush1.bf16.msra.mxu0 0
          %1064 = vmatprep.subr.bf16.mxu0 0
          %1065 = vmatpush1.bf16.msra.mxu0 0
          %1066 = vmatprep.subr.bf16.mxu0 0
          %1067 = vmatpush1.bf16.msra.mxu0 0
          %1068 = vmatprep.subr.bf16.mxu0 0
          %1069 = vmatpush1.bf16.msra.mxu0 0
          %1070 = vmatprep.subr.bf16.mxu0 0
          %1071 = vmatpush1.bf16.msra.mxu0 0
          %1072 = vmatprep.mubr.bf16.mxu0 0
          %1073 = vmatmul.mubr.bf16.gmra.mrb[0].mxu0 %v1038
          %v1074 = vpop.f32.mrb[0].mxu0
          %v1075 = vadd.f32 0.0, %v1074
          %v1076 = vpop.f32.mrb[0].mxu0
          %v1077 = vpop.f32.mrb[0].mxu0
          %v1078 = vpop.f32.mrb[0].mxu0
          %1079 = vdwg.mxu0
          %v1080 = vadd.f32 %v1019, %v1075
          %1081 = vst.msk [vmem:[#allocation6] sm:$0xff] %vm757, %v1080
        $region96: #{tpu_custom_call.1} parent=59 // pred_fallthru
          _
        %p1082 = scmp.eq.s32.totalorder %s44, 1
        %p1083 = pnand %p1006, %p1082
        %p1084 = pneg %p1083
        // Predicated region
        $region97: #{tpu_custom_call.1} parent=59 // pred_check
          _
        $region98: #{tpu_custom_call.1} parent=59 // pred_check_branch
          %1086 = sbr.rel (%p1083) target = $region100
        $region99: #{tpu_custom_call.1} parent=59 // pred_region
          %v1087 = vld [vmem:[#allocation6] sm:$0xff]
          %v1088 = vld [vmem:[%s9] sm:$0x1]
          %v1090 = vlaneseq
          %v1091 = vshrl.u32 %v1090, 7
          %v1092 = vsub.s32 0, %v1091
          %v1093 = vrot.slane %v1088, %v1092
          %v1095 = vadd.f32 %v1087, %v1093
          %1096 = vst.msk [vmem:[%s634] sm:$0xff] %vm757, %v1095
        $region100: #{tpu_custom_call.1} parent=59 // pred_fallthru
          _
        %s1097 = sand.u32 %s331, 1
        %s1098 = scalar_lea.sflag [#allocation9], %s1097
        %s1099 = sand.u32 %s331, 1
        %s1100 = smul.addr %s1099, 8
        %s1101 = scalar_lea.vmem [#allocation18], %s1100
        // Predicated region
        $region101: #{tpu_custom_call.1} parent=59 // pred_check
          %p1102 = pneg %p341
        $region102: #{tpu_custom_call.1} parent=59 // pred_check_branch
          %1104 = sbr.rel (%p1102) target = $region104
        $region103: #{tpu_custom_call.1} parent=59 // pred_region
          %s1106 = ssub.s32 128, 128
          %1107 = vsyncadd %s1098, %s1106
          %s1108 = smul.addr %s42, 3
          %s1109 = sadd.s32 %s43, %s1108
          %s1110 = smul.addr %s1109, 128
          %s1111 = scalar_lea.hbm %s10, %s1110
          %s1113 = sshll.u32 %s1101, 4
          %s1114 = int_to_ptr.vmem [resolvable:$true] %s1113
          %1116 = dma.vmem_to_hbm [thread:$0]  %s1114, 128, %s1111, %s1098
        $region104: #{tpu_custom_call.1} parent=59 // pred_fallthru
          _
      $region60: #{tpu_custom_call.1} parent=5 // pred_fallthru
        _
      %p1117 = scmp.le.s32.totalorder 2, %s31
      // Predicated region
      $region105: #{tpu_custom_call.1} parent=5 // pred_check
        %p1118 = pneg %p1117
      $region106: #{tpu_custom_call.1} parent=5 // pred_check_branch
        %1120 = sbr.rel (%p1118) target = $region108
      $region107: #{tpu_custom_call.1} parent=5 // pred_region
        %s1121 = ssub.s32 %s31, 2
        // Predicated region
        $region109: #{tpu_custom_call.1} parent=107 // pred_check
          %p1122 = pneg %p347
        $region110: #{tpu_custom_call.1} parent=107 // pred_check_branch
          %1124 = sbr.rel (%p1122) target = $region112
        $region111: #{tpu_custom_call.1} parent=107 // pred_region
          %s1125 = sand.u32 %s332, 1
          %s1126 = scalar_lea.sflag [#allocation9], %s1125
          %s1127 = sand.u32 %s332, 1
          %s1128 = smul.addr %s1127, 8
          %s1129 = scalar_lea.vmem [#allocation18], %s1128
          %1130 = dma.done %s1126, 128
        $region112: #{tpu_custom_call.1} parent=107 // pred_fallthru
          _
      $region108: #{tpu_custom_call.1} parent=5 // pred_fallthru
        _
    $region6: #{tpu_custom_call.1} parent=1 // loop_footer
      %s35 = sadd.s32 1, %s31
    $region7: #{tpu_custom_call.1} parent=1 // loop_footer_branch
      %30 = sbr.rel target = $region3
    $region8: #{tpu_custom_call.1} parent=1 // loop_exit
      _
    %1131 = vsyncpa [#allocation8], 1
    %s1132 = scalar_lea.sflag [#allocation8], 1
    %1133 = vsyncpa %s1132, 1
    %1134 = vsyncpa [#allocation11], 1
    %s1135 = scalar_lea.sflag [#allocation11], 1
    %1136 = vsyncpa %s1135, 1
    %1137 = vsyncpa [#allocation14], 1
    %s1138 = scalar_lea.sflag [#allocation14], 1
    %1139 = vsyncpa %s1138, 1
    %1140 = vsyncpa [#allocation17], 1
    %s1141 = scalar_lea.sflag [#allocation17], 1
    %1142 = vsyncpa %s1141, 1
    %1143 = vsyncpa [#allocation9], 1
    %s1144 = scalar_lea.sflag [#allocation9], 1
    %1145 = vsyncpa %s1144, 1

</llo_original>
